<compile_context>
chip_gen: v5e
topology: v5e:2x2
jax: 0.10.0
libtpu: 0.0.40
codegen_flags: <defaults>
</compile_context>

<pallas_src>
import jax
import jax.numpy as jnp
from jax.experimental import pallas as pl
from jax.experimental.pallas import tpu as pltpu

NUM_CLASSES = 10
N_PAD = 128            # lane-dense padded class dimension
IN_DIM = 32 * 32
HID = 512


def _round_up(a, m):
    return (a + m - 1) // m * m


def mlp3_eval_kernel(x_ref, w1_ref, b1_ref, w2_ref, b2_ref, w3_ref, b3_ref,
                     mask_ref, out_ref):
    # Cast f32 -> bf16 in-kernel (VPU work hidden under the MXU); avoids a separate
    # HBM convert pass in the wrapper.
    x = x_ref[...].astype(jnp.bfloat16)                                  # (TB, 1024)

    # fc1 -> clamp(-1, 1) -> relu   ==  clip(fc1, 0, 1)
    h1 = jnp.dot(x, w1_ref[...], preferred_element_type=jnp.float32) + b1_ref[...]
    h1 = jnp.clip(h1, 0.0, 1.0)

    # fc2 -> clamp(-1, 1) -> relu   ==  clip(fc2, 0, 1)
    h2 = jnp.dot(h1.astype(jnp.bfloat16), w2_ref[...],
                 preferred_element_type=jnp.float32) + b2_ref[...]
    h2 = jnp.clip(h2, 0.0, 1.0)

    # fc3 -> clamp(-1, 1); additive class mask applied AFTER the clip (so the -1e30
    # padding is not saturated away by the clamp).
    logits = jnp.dot(h2.astype(jnp.bfloat16), w3_ref[...],
                     preferred_element_type=jnp.float32) + b3_ref[...]
    logits = jnp.clip(logits, -1.0, 1.0) + mask_ref[...]

    # Softmax without the max-subtraction: logits are in [-1, 1] so exp cannot
    # overflow; padded lanes (-1e30) underflow exp to exactly 0.
    e = jnp.exp(logits)
    denom = jnp.sum(e, axis=-1, keepdims=True)
    out_ref[...] = (e * pl.reciprocal(denom, approx=True)).astype(out_ref.dtype)


def mlp3_clamp_eval(x, params, *, batch_tile=1024):
    """x: (B, 1, 32, 32) float32. params: dict of (in, out)-layout weights. -> (B, 10) probs."""
    B = x.shape[0]
    x_flat = x.reshape(B, IN_DIM)                 # keep f32; bf16 cast happens in-kernel

    # Batch tile: multiple of 8 (f32 sublane), large to amortize per-step overhead.
    tb = min(batch_tile, _round_up(B, 8))
    # v7x has 2 TensorCores; for non-trivial batches make sure the "parallel" batch
    # grid has at least 2 tiles so both cores get work.
    if B > 256 and pl.cdiv(B, tb) < 2:
        tb = _round_up(pl.cdiv(B, 2), 8)
    grid_b = pl.cdiv(B, tb)                       # ragged last block handled by Pallas

    w1 = params["w1"].astype(jnp.bfloat16)
    w2 = params["w2"].astype(jnp.bfloat16)
    b1 = params["b1"].astype(jnp.float32).reshape(1, HID)
    b2 = params["b2"].astype(jnp.float32).reshape(1, HID)
    # pad fc3 to a 128-wide (lane-dense) output; padded columns masked via class_mask
    w3 = jnp.zeros((HID, N_PAD), jnp.bfloat16).at[:, :NUM_CLASSES].set(
        params["w3"].astype(jnp.bfloat16))
    b3 = jnp.zeros((1, N_PAD), jnp.float32).at[:, :NUM_CLASSES].set(
        params["b3"].astype(jnp.float32).reshape(1, NUM_CLASSES))
    class_mask = jnp.where(jnp.arange(N_PAD) < NUM_CLASSES, 0.0, -1e30)
    class_mask = class_mask.astype(jnp.float32).reshape(1, N_PAD)

    flops = 2 * B * (IN_DIM * HID + HID * HID + HID * N_PAD)
    bytes_accessed = (B * IN_DIM * 4 + B * N_PAD * 2
                      + (w1.size + w2.size + w3.size) * 2
                      + (b1.size + b2.size + b3.size + class_mask.size) * 4)
    cost = pl.CostEstimate(flops=flops, transcendentals=B * N_PAD,
                           bytes_accessed=bytes_accessed)

    out = pl.pallas_call(
        mlp3_eval_kernel,
        out_shape=jax.ShapeDtypeStruct((B, N_PAD), jnp.bfloat16),
        grid_spec=pltpu.PrefetchScalarGridSpec(
            num_scalar_prefetch=0,
            grid=(grid_b,),
            in_specs=[
                pl.BlockSpec((tb, IN_DIM), lambda i: (i, 0)),     # x: streamed per tile
                pl.BlockSpec((IN_DIM, HID), lambda i: (0, 0)),    # weights: VMEM-resident
                pl.BlockSpec((1, HID), lambda i: (0, 0)),
                pl.BlockSpec((HID, HID), lambda i: (0, 0)),
                pl.BlockSpec((1, HID), lambda i: (0, 0)),
                pl.BlockSpec((HID, N_PAD), lambda i: (0, 0)),
                pl.BlockSpec((1, N_PAD), lambda i: (0, 0)),
                pl.BlockSpec((1, N_PAD), lambda i: (0, 0)),       # additive class mask
            ],
            out_specs=pl.BlockSpec((tb, N_PAD), lambda i: (i, 0)),
        ),
        compiler_params=pltpu.CompilerParams(
            dimension_semantics=("parallel",),        # megacore sharding of batch tiles
            vmem_limit_bytes=32 * 1024 * 1024,        # fits v7x (64 MiB phys) w/ headroom
        ),
        cost_estimate=cost,
    )(x_flat, w1, b1, w2, b2, w3, b3, class_mask)

    # Slice off the padded class lanes; tiny (B, 10) cast back to f32.
    return out[:, :NUM_CLASSES].astype(jnp.float32)


def init_params(key):
    """Deterministic init mimicking torch.nn.Linear default (U(-1/sqrt(fan_in), +))."""
    def linear(k, fan_in, fan_out):
        kw, kb = jax.random.split(k)
        bound = 1.0 / (fan_in ** 0.5)
        w = jax.random.uniform(kw, (fan_in, fan_out), jnp.float32, -bound, bound)  # (in, out)
        b = jax.random.uniform(kb, (1, fan_out), jnp.float32, -bound, bound)
        return w, b

    k1, k2, k3 = jax.random.split(key, 3)
    w1, b1 = linear(k1, IN_DIM, HID)
    w2, b2 = linear(k2, HID, HID)
    w3, b3 = linear(k3, HID, NUM_CLASSES)
    return {"w1": w1, "b1": b1, "w2": w2, "b2": b2, "w3": w3, "b3": b3}


def mlp3_clamp_eval_ref(x, params):
    """Pure-JAX f32 reference with exact PyTorch forward semantics."""
    B = x.shape[0]
    xf = x.reshape(B, IN_DIM).astype(jnp.float32)
    h1 = jnp.maximum(jnp.clip(xf @ params["w1"] + params["b1"], -1.0, 1.0), 0.0)
    h2 = jnp.maximum(jnp.clip(h1 @ params["w2"] + params["b2"], -1.0, 1.0), 0.0)
    logits = jnp.clip(h2 @ params["w3"] + params["b3"], -1.0, 1.0)
    return jax.nn.softmax(logits, axis=1)


if __name__ == "__main__":
    key = jax.random.PRNGKey(0)
    kx, kp = jax.random.split(key)

    B = 2
    x = jax.random.normal(kx, (B, 1, 32, 32), dtype=jnp.float32)
    params = init_params(kp)

    out = jax.block_until_ready(mlp3_clamp_eval(x, params))
    ref = mlp3_clamp_eval_ref(x, params)

    assert out.shape == (B, NUM_CLASSES)
    # softmax rows must sum to ~1 (bf16 store + approx reciprocal -> loose tolerance)
    assert bool(jnp.all(jnp.abs(jnp.sum(out, axis=-1) - 1.0) < 2e-2))
    # bf16 matmuls / bf16 output vs f32 reference: loose tolerance
    assert bool(jnp.max(jnp.abs(out - ref)) < 5e-2)

    print("KERNEL_OK")
</pallas_src>

<mosaic_0001>
module attributes {stable_mosaic.version = 11 : i64} {
  func.func @mlp3_eval_kernel(%arg0: i32, %arg1: memref<8x1024xf32, #tpu.memory_space<vmem>>, %arg2: memref<1024x512xbf16, #tpu.memory_space<vmem>>, %arg3: memref<1x512xf32, #tpu.memory_space<vmem>>, %arg4: memref<512x512xbf16, #tpu.memory_space<vmem>>, %arg5: memref<1x512xf32, #tpu.memory_space<vmem>>, %arg6: memref<512x128xbf16, #tpu.memory_space<vmem>>, %arg7: memref<1x128xf32, #tpu.memory_space<vmem>>, %arg8: memref<1x128xf32, #tpu.memory_space<vmem>>, %arg9: memref<8x128xbf16, #tpu.memory_space<vmem>>) attributes {dimension_semantics = [#tpu.dimension_semantics<parallel>], iteration_bounds = array<i64: 1>, scalar_prefetch = 0 : i64, scratch_operands = 0 : i64, tpu.core_type = #tpu.core_type<tc>, window_params = [{transform_indices = @transform_0, window_bounds = array<i64: 8, 1024>}, {pipeline_mode = #tpu.pipeline_mode<synchronous>, transform_indices = @transform_1, window_bounds = array<i64: 1024, 512>}, {pipeline_mode = #tpu.pipeline_mode<synchronous>, transform_indices = @transform_2, window_bounds = array<i64: 1, 512>}, {pipeline_mode = #tpu.pipeline_mode<synchronous>, transform_indices = @transform_3, window_bounds = array<i64: 512, 512>}, {pipeline_mode = #tpu.pipeline_mode<synchronous>, transform_indices = @transform_4, window_bounds = array<i64: 1, 512>}, {pipeline_mode = #tpu.pipeline_mode<synchronous>, transform_indices = @transform_5, window_bounds = array<i64: 512, 128>}, {pipeline_mode = #tpu.pipeline_mode<synchronous>, transform_indices = @transform_6, window_bounds = array<i64: 1, 128>}, {pipeline_mode = #tpu.pipeline_mode<synchronous>, transform_indices = @transform_7, window_bounds = array<i64: 1, 128>}, {transform_indices = @transform_8, window_bounds = array<i64: 8, 128>}]} {
    %c0 = arith.constant 0 : index
    %c0_0 = arith.constant 0 : index
    %0 = vector.load %arg1[%c0, %c0_0] : memref<8x1024xf32, #tpu.memory_space<vmem>>, vector<8x1024xf32>
    %1 = arith.truncf %0 : vector<8x1024xf32> to vector<8x1024xbf16>
    %c0_1 = arith.constant 0 : index
    %c0_2 = arith.constant 0 : index
    %2 = vector.load %arg2[%c0_1, %c0_2] : memref<1024x512xbf16, #tpu.memory_space<vmem>>, vector<1024x512xbf16>
    %cst = arith.constant dense<0.000000e+00> : vector<8x512xf32>
    %3 = tpu.matmul %1, %2, %cst {dimension_numbers = #tpu.dot_dimension_numbers<[1], [0], [0], [1], [0, 0, 1, 1], [], []>} : vector<8x1024xbf16>, vector<1024x512xbf16>, vector<8x512xf32> -> vector<8x512xf32>
    %c0_3 = arith.constant 0 : index
    %c0_4 = arith.constant 0 : index
    %4 = vector.load %arg3[%c0_3, %c0_4] : memref<1x512xf32, #tpu.memory_space<vmem>>, vector<1x512xf32>
    %5 = vector.broadcast %4 : vector<1x512xf32> to vector<8x512xf32>
    %6 = arith.addf %3, %5 : vector<8x512xf32>
    %cst_5 = arith.constant 0.000000e+00 : f32
    %cst_6 = arith.constant 1.000000e+00 : f32
    %7 = vector.broadcast %cst_5 : f32 to vector<8x512xf32>
    %8 = arith.maximumf %7, %6 : vector<8x512xf32>
    %9 = vector.broadcast %cst_6 : f32 to vector<8x512xf32>
    %10 = arith.minimumf %9, %8 : vector<8x512xf32>
    %11 = arith.truncf %10 : vector<8x512xf32> to vector<8x512xbf16>
    %c0_7 = arith.constant 0 : index
    %c0_8 = arith.constant 0 : index
    %12 = vector.load %arg4[%c0_7, %c0_8] : memref<512x512xbf16, #tpu.memory_space<vmem>>, vector<512x512xbf16>
    %cst_9 = arith.constant dense<0.000000e+00> : vector<8x512xf32>
    %13 = tpu.matmul %11, %12, %cst_9 {dimension_numbers = #tpu.dot_dimension_numbers<[1], [0], [0], [1], [0, 0, 1, 1], [], []>} : vector<8x512xbf16>, vector<512x512xbf16>, vector<8x512xf32> -> vector<8x512xf32>
    %c0_10 = arith.constant 0 : index
    %c0_11 = arith.constant 0 : index
    %14 = vector.load %arg5[%c0_10, %c0_11] : memref<1x512xf32, #tpu.memory_space<vmem>>, vector<1x512xf32>
    %15 = vector.broadcast %14 : vector<1x512xf32> to vector<8x512xf32>
    %16 = arith.addf %13, %15 : vector<8x512xf32>
    %cst_12 = arith.constant 0.000000e+00 : f32
    %cst_13 = arith.constant 1.000000e+00 : f32
    %17 = vector.broadcast %cst_12 : f32 to vector<8x512xf32>
    %18 = arith.maximumf %17, %16 : vector<8x512xf32>
    %19 = vector.broadcast %cst_13 : f32 to vector<8x512xf32>
    %20 = arith.minimumf %19, %18 : vector<8x512xf32>
    %21 = arith.truncf %20 : vector<8x512xf32> to vector<8x512xbf16>
    %c0_14 = arith.constant 0 : index
    %c0_15 = arith.constant 0 : index
    %22 = vector.load %arg6[%c0_14, %c0_15] : memref<512x128xbf16, #tpu.memory_space<vmem>>, vector<512x128xbf16>
    %cst_16 = arith.constant dense<0.000000e+00> : vector<8x128xf32>
    %23 = tpu.matmul %21, %22, %cst_16 {dimension_numbers = #tpu.dot_dimension_numbers<[1], [0], [0], [1], [0, 0, 1, 1], [], []>} : vector<8x512xbf16>, vector<512x128xbf16>, vector<8x128xf32> -> vector<8x128xf32>
    %c0_17 = arith.constant 0 : index
    %c0_18 = arith.constant 0 : index
    %24 = vector.load %arg7[%c0_17, %c0_18] : memref<1x128xf32, #tpu.memory_space<vmem>>, vector<1x128xf32>
    %25 = vector.broadcast %24 : vector<1x128xf32> to vector<8x128xf32>
    %26 = arith.addf %23, %25 : vector<8x128xf32>
    %cst_19 = arith.constant -1.000000e+00 : f32
    %cst_20 = arith.constant 1.000000e+00 : f32
    %27 = vector.broadcast %cst_19 : f32 to vector<8x128xf32>
    %28 = arith.maximumf %27, %26 : vector<8x128xf32>
    %29 = vector.broadcast %cst_20 : f32 to vector<8x128xf32>
    %30 = arith.minimumf %29, %28 : vector<8x128xf32>
    %c0_21 = arith.constant 0 : index
    %c0_22 = arith.constant 0 : index
    %31 = vector.load %arg8[%c0_21, %c0_22] : memref<1x128xf32, #tpu.memory_space<vmem>>, vector<1x128xf32>
    %32 = vector.broadcast %31 : vector<1x128xf32> to vector<8x128xf32>
    %33 = arith.addf %30, %32 : vector<8x128xf32>
    %34 = math.exp %33 : vector<8x128xf32>
    %cst_23 = arith.constant dense<0.000000e+00> : vector<8xf32>
    %35 = vector.multi_reduction <add>, %34, %cst_23 [1] : vector<8x128xf32> to vector<8xf32>
    %36 = vector.shape_cast %35 : vector<8xf32> to vector<8x1xf32>
    %37 = tpu.reciprocal %36 {approx = true} : vector<8x1xf32> -> vector<8x1xf32>
    %38 = vector.broadcast %37 : vector<8x1xf32> to vector<8x128xf32>
    %39 = arith.mulf %34, %38 : vector<8x128xf32>
    %40 = arith.truncf %39 : vector<8x128xf32> to vector<8x128xbf16>
    %c0_24 = arith.constant 0 : index
    %c0_25 = arith.constant 0 : index
    %41 = vector.load %arg9[%c0_24, %c0_25] : memref<8x128xbf16, #tpu.memory_space<vmem>>, vector<8x128xbf16>
    tpu.vector_store %arg9[%c0_24, %c0_25], %40 {strides = array<i32>} : memref<8x128xbf16, #tpu.memory_space<vmem>>, vector<8x128xbf16>,
    return
  }
  func.func @transform_0(%arg0: i32) -> (i32, i32) {
    %c0_i32 = arith.constant 0 : i32
    %c0_i32_0 = arith.constant 0 : i32
    return %arg0, %c0_i32 : i32, i32
  }
  func.func @transform_1(%arg0: i32) -> (i32, i32) {
    %c0_i32 = arith.constant 0 : i32
    %c0_i32_0 = arith.constant 0 : i32
    %c0_i32_1 = arith.constant 0 : i32
    return %c0_i32, %c0_i32_0 : i32, i32
  }
  func.func @transform_2(%arg0: i32) -> (i32, i32) {
    %c0_i32 = arith.constant 0 : i32
    %c0_i32_0 = arith.constant 0 : i32
    %c0_i32_1 = arith.constant 0 : i32
    return %c0_i32, %c0_i32_0 : i32, i32
  }
  func.func @transform_3(%arg0: i32) -> (i32, i32) {
    %c0_i32 = arith.constant 0 : i32
    %c0_i32_0 = arith.constant 0 : i32
    %c0_i32_1 = arith.constant 0 : i32
    return %c0_i32, %c0_i32_0 : i32, i32
  }
  func.func @transform_4(%arg0: i32) -> (i32, i32) {
    %c0_i32 = arith.constant 0 : i32
    %c0_i32_0 = arith.constant 0 : i32
    %c0_i32_1 = arith.constant 0 : i32
    return %c0_i32, %c0_i32_0 : i32, i32
  }
  func.func @transform_5(%arg0: i32) -> (i32, i32) {
    %c0_i32 = arith.constant 0 : i32
    %c0_i32_0 = arith.constant 0 : i32
    %c0_i32_1 = arith.constant 0 : i32
    return %c0_i32, %c0_i32_0 : i32, i32
  }
  func.func @transform_6(%arg0: i32) -> (i32, i32) {
    %c0_i32 = arith.constant 0 : i32
    %c0_i32_0 = arith.constant 0 : i32
    %c0_i32_1 = arith.constant 0 : i32
    return %c0_i32, %c0_i32_0 : i32, i32
  }
  func.func @transform_7(%arg0: i32) -> (i32, i32) {
    %c0_i32 = arith.constant 0 : i32
    %c0_i32_0 = arith.constant 0 : i32
    %c0_i32_1 = arith.constant 0 : i32
    return %c0_i32, %c0_i32_0 : i32, i32
  }
  func.func @transform_8(%arg0: i32) -> (i32, i32) {
    %c0_i32 = arith.constant 0 : i32
    %c0_i32_0 = arith.constant 0 : i32
    return %arg0, %c0_i32 : i32, i32
  }
}

</mosaic_0001>

<llo_original>
// kernel: tpu_custom_call.1
$region0: #{tpu_custom_call.1}
  #allocation0 [shape = 'u32[]', space=smem, size = 0x4, offset = 0x4, fixed_abs, tag = 'smem constant byte address 0x4 - core index']
  #allocation1 [shape = 'u32[72,128]{1,0:T(1,128)}', space=vmem, size = 0x9000, scoped, tag = 'internal scratch']
  %s0 = inlined_call_operand.hbm [shape: f32[2,1024], index: 0, kind: input, shape index: {}]
  %s1 = inlined_call_operand.hbm [shape: bf16[1024,512], index: 1, kind: input, shape index: {}]
  %s2 = inlined_call_operand.hbm [shape: f32[1,512], index: 2, kind: input, shape index: {}]
  %s3 = inlined_call_operand.hbm [shape: bf16[512,512], index: 3, kind: input, shape index: {}]
  %s4 = inlined_call_operand.hbm [shape: f32[1,512], index: 4, kind: input, shape index: {}]
  %s5 = inlined_call_operand.hbm [shape: bf16[512,128], index: 5, kind: input, shape index: {}]
  %s6 = inlined_call_operand.vmem [shape: f32[1,128], index: 6, kind: input, shape index: {}]
  %s7 = inlined_call_operand.vmem [shape: f32[1,128], index: 7, kind: input, shape index: {}]
  %s8 = inlined_call_operand.hbm [shape: bf16[2,128], index: 8, kind: output, shape index: {}]
  %s9 = sld [smem:[#allocation0]]
  $region66: #{tpu_custom_call.1} parent=0
    _
  %s11 = ssub.s32 1, %s9
  %s12 = scalar_select 0, %s11, %s9
  $region1: #{tpu_custom_call.1} parent=0
    #allocation2 [shape = 'u8[32768]{0}', space=vmem, size = 0x8000, scoped, tag = 'input window, operand 0, single buffered']
    #allocation3 [shape = 's32[1]{0}', space=sflag, size = 0x4, scoped, tag = 'scoped memory for tpu_custom_call.1']
    #allocation4 [shape = 's32[1]{0}', space=sflag, size = 0x4, scoped, tag = 'scoped memory for tpu_custom_call.1']
    #allocation5 [shape = 'u8[1048576]{0}', space=vmem, size = 0x100000, scoped, tag = 'input window, operand 1, single buffered']
    #allocation6 [shape = 's32[1]{0}', space=sflag, size = 0x4, scoped, tag = 'scoped memory for tpu_custom_call.1']
    #allocation7 [shape = 'u8[2048]{0}', space=vmem, size = 0x800, scoped, tag = 'input window, operand 2, single buffered']
    #allocation8 [shape = 'u8[524288]{0}', space=vmem, size = 0x80000, scoped, tag = 'input window, operand 3, single buffered']
    #allocation9 [shape = 's32[1]{0}', space=sflag, size = 0x4, scoped, tag = 'scoped memory for tpu_custom_call.1']
    #allocation10 [shape = 'u8[2048]{0}', space=vmem, size = 0x800, scoped, tag = 'input window, operand 4, single buffered']
    #allocation11 [shape = 'u8[131072]{0}', space=vmem, size = 0x20000, scoped, tag = 'input window, operand 5, single buffered']
    #allocation12 [shape = 's32[1]{0}', space=sflag, size = 0x4, scoped, tag = 'scoped memory for tpu_custom_call.1']
    #allocation13 [shape = 'u8[2048]{0}', space=vmem, size = 0x800, scoped, tag = 'output window, operand 0, single buffered']
    %13 = vsyncpa [#allocation3], 0
    %14 = vsyncpa [#allocation6], 0
    %15 = vsyncpa [#allocation9], 0
    %16 = vsyncpa [#allocation12], 0
    %17 = vsyncpa [#allocation4], 0
    // Predicated region
    $region2: #{tpu_custom_call.1} parent=1 // pred_check
      _
    $region3: #{tpu_custom_call.1} parent=1 // pred_check_branch
      %19 = sbr.rel (0) target = $region5
    $region4: #{tpu_custom_call.1} parent=1 // pred_region
      %21 = vsyncadd [#allocation3], 768
      %s22 = sshll.u32 %s0, 4
      %s23 = int_to_ptr.hbm [resolvable:$true] %s22
      %s24 = sshll.u32 [#allocation2], 4
      %s25 = int_to_ptr.vmem [resolvable:$true] %s24
      %30 = dma.hbm_to_vmem [thread:$0]  %s23, 256, %s25, [#allocation3], 256, 256, 16
    $region5: #{tpu_custom_call.1} parent=1 // pred_fallthru
      _
    // Predicated region
    $region6: #{tpu_custom_call.1} parent=1 // pred_check
      _
    $region7: #{tpu_custom_call.1} parent=1 // pred_check_branch
      %32 = sbr.rel (0) target = $region9
    $region8: #{tpu_custom_call.1} parent=1 // pred_region
      %34 = vsyncadd [#allocation6], 0
      %s35 = sshll.u32 %s1, 4
      %s36 = int_to_ptr.hbm [resolvable:$true] %s35
      %s37 = sshll.u32 [#allocation5], 4
      %s38 = int_to_ptr.vmem [resolvable:$true] %s37
      %43 = dma.hbm_to_vmem [thread:$0]  %s36, 32768, %s38, [#allocation6], 256, 256, 16
    $region9: #{tpu_custom_call.1} parent=1 // pred_fallthru
      _
    // Predicated region
    $region10: #{tpu_custom_call.1} parent=1 // pred_check
      _
    $region11: #{tpu_custom_call.1} parent=1 // pred_check_branch
      %45 = sbr.rel (0) target = $region13
    $region12: #{tpu_custom_call.1} parent=1 // pred_region
      %47 = vsyncadd [#allocation6], 0
      %s49 = sshll.u32 %s2, 4
      %s50 = int_to_ptr.hbm [resolvable:$true] %s49
      %s51 = sshll.u32 [#allocation7], 4
      %s52 = int_to_ptr.vmem [resolvable:$true] %s51
      %54 = dma.hbm_to_vmem [thread:$0]  %s50, 64, %s52, [#allocation6]
    $region13: #{tpu_custom_call.1} parent=1 // pred_fallthru
      _
    // Predicated region
    $region14: #{tpu_custom_call.1} parent=1 // pred_check
      _
    $region15: #{tpu_custom_call.1} parent=1 // pred_check_branch
      %56 = sbr.rel (0) target = $region17
    $region16: #{tpu_custom_call.1} parent=1 // pred_region
      %58 = vsyncadd [#allocation9], 0
      %s59 = sshll.u32 %s3, 4
      %s60 = int_to_ptr.hbm [resolvable:$true] %s59
      %s61 = sshll.u32 [#allocation8], 4
      %s62 = int_to_ptr.vmem [resolvable:$true] %s61
      %67 = dma.hbm_to_vmem [thread:$0]  %s60, 16384, %s62, [#allocation9], 256, 256, 16
    $region17: #{tpu_custom_call.1} parent=1 // pred_fallthru
      _
    // Predicated region
    $region18: #{tpu_custom_call.1} parent=1 // pred_check
      _
    $region19: #{tpu_custom_call.1} parent=1 // pred_check_branch
      %69 = sbr.rel (0) target = $region21
    $region20: #{tpu_custom_call.1} parent=1 // pred_region
      %71 = vsyncadd [#allocation9], 0
      %s73 = sshll.u32 %s4, 4
      %s74 = int_to_ptr.hbm [resolvable:$true] %s73
      %s75 = sshll.u32 [#allocation10], 4
      %s76 = int_to_ptr.vmem [resolvable:$true] %s75
      %78 = dma.hbm_to_vmem [thread:$0]  %s74, 64, %s76, [#allocation9]
    $region21: #{tpu_custom_call.1} parent=1 // pred_fallthru
      _
    // Predicated region
    $region22: #{tpu_custom_call.1} parent=1 // pred_check
      _
    $region23: #{tpu_custom_call.1} parent=1 // pred_check_branch
      %80 = sbr.rel (0) target = $region25
    $region24: #{tpu_custom_call.1} parent=1 // pred_region
      %82 = vsyncadd [#allocation12], 0
      %s83 = sshll.u32 %s5, 4
      %s84 = int_to_ptr.hbm [resolvable:$true] %s83
      %s85 = sshll.u32 [#allocation11], 4
      %s86 = int_to_ptr.vmem [resolvable:$true] %s85
      %91 = dma.hbm_to_vmem [thread:$0]  %s84, 4096, %s86, [#allocation12], 64, 64, 4
    $region25: #{tpu_custom_call.1} parent=1 // pred_fallthru
      _
    // Predicated region
    $region26: #{tpu_custom_call.1} parent=1 // pred_check
      _
    $region27: #{tpu_custom_call.1} parent=1 // pred_check_branch
      %93 = sbr.rel (0) target = $region29
    $region28: #{tpu_custom_call.1} parent=1 // pred_region
      _
    $region29: #{tpu_custom_call.1} parent=1 // pred_fallthru
      _
    // Predicated region
    $region30: #{tpu_custom_call.1} parent=1 // pred_check
      _
    $region31: #{tpu_custom_call.1} parent=1 // pred_check_branch
      %95 = sbr.rel (0) target = $region33
    $region32: #{tpu_custom_call.1} parent=1 // pred_region
      _
    $region33: #{tpu_custom_call.1} parent=1 // pred_fallthru
      _
    // Predicated region
    $region34: #{tpu_custom_call.1} parent=1 // pred_check
      _
    $region35: #{tpu_custom_call.1} parent=1 // pred_check_branch
      %97 = sbr.rel (0) target = $region37
    $region36: #{tpu_custom_call.1} parent=1 // pred_region
      %99 = dma.done [#allocation3], 1024
    $region37: #{tpu_custom_call.1} parent=1 // pred_fallthru
      _
    // Predicated region
    $region38: #{tpu_custom_call.1} parent=1 // pred_check
      _
    $region39: #{tpu_custom_call.1} parent=1 // pred_check_branch
      %101 = sbr.rel (0) target = $region41
    $region40: #{tpu_custom_call.1} parent=1 // pred_region
      %103 = dma.done [#allocation6], 32768
    $region41: #{tpu_custom_call.1} parent=1 // pred_fallthru
      _
    // Predicated region
    $region42: #{tpu_custom_call.1} parent=1 // pred_check
      _
    $region43: #{tpu_custom_call.1} parent=1 // pred_check_branch
      %105 = sbr.rel (0) target = $region45
    $region44: #{tpu_custom_call.1} parent=1 // pred_region
      %107 = dma.done [#allocation6], 64
    $region45: #{tpu_custom_call.1} parent=1 // pred_fallthru
      _
    // Predicated region
    $region46: #{tpu_custom_call.1} parent=1 // pred_check
      _
    $region47: #{tpu_custom_call.1} parent=1 // pred_check_branch
      %109 = sbr.rel (0) target = $region49
    $region48: #{tpu_custom_call.1} parent=1 // pred_region
      %111 = dma.done [#allocation9], 16384
    $region49: #{tpu_custom_call.1} parent=1 // pred_fallthru
      _
    // Predicated region
    $region50: #{tpu_custom_call.1} parent=1 // pred_check
      _
    $region51: #{tpu_custom_call.1} parent=1 // pred_check_branch
      %113 = sbr.rel (0) target = $region53
    $region52: #{tpu_custom_call.1} parent=1 // pred_region
      %115 = dma.done [#allocation9], 64
    $region53: #{tpu_custom_call.1} parent=1 // pred_fallthru
      _
    // Predicated region
    $region54: #{tpu_custom_call.1} parent=1 // pred_check
      _
    $region55: #{tpu_custom_call.1} parent=1 // pred_check_branch
      %117 = sbr.rel (0) target = $region57
    $region56: #{tpu_custom_call.1} parent=1 // pred_region
      %119 = dma.done [#allocation12], 4096
    $region57: #{tpu_custom_call.1} parent=1 // pred_fallthru
      _
    %v120 = vld [vmem:[#allocation2] sm:$0xff]
    %v121 = vld [vmem:[#allocation2 + $0x8] sm:$0xff]
    %v122 = vld [vmem:[#allocation2 + $0x10] sm:$0xff]
    %v123 = vld [vmem:[#allocation2 + $0x18] sm:$0xff]
    %v124 = vld [vmem:[#allocation2 + $0x20] sm:$0xff]
    %v125 = vld [vmem:[#allocation2 + $0x28] sm:$0xff]
    %v126 = vld [vmem:[#allocation2 + $0x30] sm:$0xff]
    %v127 = vld [vmem:[#allocation2 + $0x38] sm:$0xff]
    %136 = vst [vmem:[#allocation1] ss:$4 sm:$0xff] %v120
    %s137 = scalar_lea.vmem [#allocation1], 1
    %138 = vst [vmem:[%s137] ss:$4 sm:$0xff] %v122
    %s139 = scalar_lea.vmem [#allocation1], 2
    %140 = vst [vmem:[%s139] ss:$4 sm:$0xff] %v124
    %s141 = scalar_lea.vmem [#allocation1], 3
    %142 = vst [vmem:[%s141] ss:$4 sm:$0xff] %v126
    %s143 = scalar_lea.vmem [#allocation1], 32
    %144 = vst [vmem:[%s143] ss:$4 sm:$0xff] %v121
    %s145 = scalar_lea.vmem [#allocation1], 33
    %146 = vst [vmem:[%s145] ss:$4 sm:$0xff] %v123
    %s147 = scalar_lea.vmem [#allocation1], 34
    %148 = vst [vmem:[%s147] ss:$4 sm:$0xff] %v125
    %s149 = scalar_lea.vmem [#allocation1], 35
    %150 = vst [vmem:[%s149] ss:$4 sm:$0xff] %v127
    %v151 = vld.sshfl [vmem:[#allocation1] sm:$0xff pattern:$0x73625140]
    %v152 = vld.sshfl [vmem:[#allocation1 + $0x8] sm:$0xff pattern:$0x73625140]
    %v153 = vld.sshfl [vmem:[#allocation1 + $0x10] sm:$0xff pattern:$0x73625140]
    %v154 = vld.sshfl [vmem:[#allocation1 + $0x18] sm:$0xff pattern:$0x73625140]
    %v155 = vld.sshfl [vmem:[#allocation1 + $0x20] sm:$0xff pattern:$0x73625140]
    %v156 = vld.sshfl [vmem:[#allocation1 + $0x28] sm:$0xff pattern:$0x73625140]
    %v157 = vld.sshfl [vmem:[#allocation1 + $0x30] sm:$0xff pattern:$0x73625140]
    %v158 = vld.sshfl [vmem:[#allocation1 + $0x38] sm:$0xff pattern:$0x73625140]
    %v167 = vpack.c.bf16 %v151, %v151
    %v168 = vpack.c.bf16 %v152, %v152
    %v169 = vpack.c.bf16 %v153, %v153
    %v170 = vpack.c.bf16 %v154, %v154
    %v171 = vpack.c.bf16 %v155, %v155
    %v172 = vpack.c.bf16 %v156, %v156
    %v173 = vpack.c.bf16 %v157, %v157
    %v174 = vpack.c.bf16 %v158, %v158
    %v175 = vld [vmem:[#allocation5] sm:$0xff]
    %v176 = vld [vmem:[#allocation5 + $0x8] sm:$0xff]
    %v177 = vld [vmem:[#allocation5 + $0x10] sm:$0xff]
    %v178 = vld [vmem:[#allocation5 + $0x18] sm:$0xff]
    %v179 = vld [vmem:[#allocation5 + $0x20] sm:$0xff]
    %v180 = vld [vmem:[#allocation5 + $0x28] sm:$0xff]
    %v181 = vld [vmem:[#allocation5 + $0x30] sm:$0xff]
    %v182 = vld [vmem:[#allocation5 + $0x38] sm:$0xff]
    %v183 = vld [vmem:[#allocation5 + $0x40] sm:$0xff]
    %v184 = vld [vmem:[#allocation5 + $0x48] sm:$0xff]
    %v185 = vld [vmem:[#allocation5 + $0x50] sm:$0xff]
    %v186 = vld [vmem:[#allocation5 + $0x58] sm:$0xff]
    %v187 = vld [vmem:[#allocation5 + $0x60] sm:$0xff]
    %v188 = vld [vmem:[#allocation5 + $0x68] sm:$0xff]
    %v189 = vld [vmem:[#allocation5 + $0x70] sm:$0xff]
    %v190 = vld [vmem:[#allocation5 + $0x78] sm:$0xff]
    %v191 = vld [vmem:[#allocation5 + $0x80] sm:$0xff]
    %v192 = vld [vmem:[#allocation5 + $0x88] sm:$0xff]
    %v193 = vld [vmem:[#allocation5 + $0x90] sm:$0xff]
    %v194 = vld [vmem:[#allocation5 + $0x98] sm:$0xff]
    %v195 = vld [vmem:[#allocation5 + $0xa0] sm:$0xff]
    %v196 = vld [vmem:[#allocation5 + $0xa8] sm:$0xff]
    %v197 = vld [vmem:[#allocation5 + $0xb0] sm:$0xff]
    %v198 = vld [vmem:[#allocation5 + $0xb8] sm:$0xff]
    %v199 = vld [vmem:[#allocation5 + $0xc0] sm:$0xff]
    %v200 = vld [vmem:[#allocation5 + $0xc8] sm:$0xff]
    %v201 = vld [vmem:[#allocation5 + $0xd0] sm:$0xff]
    %v202 = vld [vmem:[#allocation5 + $0xd8] sm:$0xff]
    %v203 = vld [vmem:[#allocation5 + $0xe0] sm:$0xff]
    %v204 = vld [vmem:[#allocation5 + $0xe8] sm:$0xff]
    %v205 = vld [vmem:[#allocation5 + $0xf0] sm:$0xff]
    %v206 = vld [vmem:[#allocation5 + $0xf8] sm:$0xff]
    %v207 = vld [vmem:[#allocation5 + $0x100] sm:$0xff]
    %v208 = vld [vmem:[#allocation5 + $0x108] sm:$0xff]
    %v209 = vld [vmem:[#allocation5 + $0x110] sm:$0xff]
    %v210 = vld [vmem:[#allocation5 + $0x118] sm:$0xff]
    %v211 = vld [vmem:[#allocation5 + $0x120] sm:$0xff]
    %v212 = vld [vmem:[#allocation5 + $0x128] sm:$0xff]
    %v213 = vld [vmem:[#allocation5 + $0x130] sm:$0xff]
    %v214 = vld [vmem:[#allocation5 + $0x138] sm:$0xff]
    %v215 = vld [vmem:[#allocation5 + $0x140] sm:$0xff]
    %v216 = vld [vmem:[#allocation5 + $0x148] sm:$0xff]
    %v217 = vld [vmem:[#allocation5 + $0x150] sm:$0xff]
    %v218 = vld [vmem:[#allocation5 + $0x158] sm:$0xff]
    %v219 = vld [vmem:[#allocation5 + $0x160] sm:$0xff]
    %v220 = vld [vmem:[#allocation5 + $0x168] sm:$0xff]
    %v221 = vld [vmem:[#allocation5 + $0x170] sm:$0xff]
    %v222 = vld [vmem:[#allocation5 + $0x178] sm:$0xff]
    %v223 = vld [vmem:[#allocation5 + $0x180] sm:$0xff]
    %v224 = vld [vmem:[#allocation5 + $0x188] sm:$0xff]
    %v225 = vld [vmem:[#allocation5 + $0x190] sm:$0xff]
    %v226 = vld [vmem:[#allocation5 + $0x198] sm:$0xff]
    %v227 = vld [vmem:[#allocation5 + $0x1a0] sm:$0xff]
    %v228 = vld [vmem:[#allocation5 + $0x1a8] sm:$0xff]
    %v229 = vld [vmem:[#allocation5 + $0x1b0] sm:$0xff]
    %v230 = vld [vmem:[#allocation5 + $0x1b8] sm:$0xff]
    %v231 = vld [vmem:[#allocation5 + $0x1c0] sm:$0xff]
    %v232 = vld [vmem:[#allocation5 + $0x1c8] sm:$0xff]
    %v233 = vld [vmem:[#allocation5 + $0x1d0] sm:$0xff]
    %v234 = vld [vmem:[#allocation5 + $0x1d8] sm:$0xff]
    %v235 = vld [vmem:[#allocation5 + $0x1e0] sm:$0xff]
    %v236 = vld [vmem:[#allocation5 + $0x1e8] sm:$0xff]
    %v237 = vld [vmem:[#allocation5 + $0x1f0] sm:$0xff]
    %v238 = vld [vmem:[#allocation5 + $0x1f8] sm:$0xff]
    %v239 = vld [vmem:[#allocation5 + $0x200] sm:$0xff]
    %v240 = vld [vmem:[#allocation5 + $0x208] sm:$0xff]
    %v241 = vld [vmem:[#allocation5 + $0x210] sm:$0xff]
    %v242 = vld [vmem:[#allocation5 + $0x218] sm:$0xff]
    %v243 = vld [vmem:[#allocation5 + $0x220] sm:$0xff]
    %v244 = vld [vmem:[#allocation5 + $0x228] sm:$0xff]
    %v245 = vld [vmem:[#allocation5 + $0x230] sm:$0xff]
    %v246 = vld [vmem:[#allocation5 + $0x238] sm:$0xff]
    %v247 = vld [vmem:[#allocation5 + $0x240] sm:$0xff]
    %v248 = vld [vmem:[#allocation5 + $0x248] sm:$0xff]
    %v249 = vld [vmem:[#allocation5 + $0x250] sm:$0xff]
    %v250 = vld [vmem:[#allocation5 + $0x258] sm:$0xff]
    %v251 = vld [vmem:[#allocation5 + $0x260] sm:$0xff]
    %v252 = vld [vmem:[#allocation5 + $0x268] sm:$0xff]
    %v253 = vld [vmem:[#allocation5 + $0x270] sm:$0xff]
    %v254 = vld [vmem:[#allocation5 + $0x278] sm:$0xff]
    %v255 = vld [vmem:[#allocation5 + $0x280] sm:$0xff]
    %v256 = vld [vmem:[#allocation5 + $0x288] sm:$0xff]
    %v257 = vld [vmem:[#allocation5 + $0x290] sm:$0xff]
    %v258 = vld [vmem:[#allocation5 + $0x298] sm:$0xff]
    %v259 = vld [vmem:[#allocation5 + $0x2a0] sm:$0xff]
    %v260 = vld [vmem:[#allocation5 + $0x2a8] sm:$0xff]
    %v261 = vld [vmem:[#allocation5 + $0x2b0] sm:$0xff]
    %v262 = vld [vmem:[#allocation5 + $0x2b8] sm:$0xff]
    %v263 = vld [vmem:[#allocation5 + $0x2c0] sm:$0xff]
    %v264 = vld [vmem:[#allocation5 + $0x2c8] sm:$0xff]
    %v265 = vld [vmem:[#allocation5 + $0x2d0] sm:$0xff]
    %v266 = vld [vmem:[#allocation5 + $0x2d8] sm:$0xff]
    %v267 = vld [vmem:[#allocation5 + $0x2e0] sm:$0xff]
    %v268 = vld [vmem:[#allocation5 + $0x2e8] sm:$0xff]
    %v269 = vld [vmem:[#allocation5 + $0x2f0] sm:$0xff]
    %v270 = vld [vmem:[#allocation5 + $0x2f8] sm:$0xff]
    %v271 = vld [vmem:[#allocation5 + $0x300] sm:$0xff]
    %v272 = vld [vmem:[#allocation5 + $0x308] sm:$0xff]
    %v273 = vld [vmem:[#allocation5 + $0x310] sm:$0xff]
    %v274 = vld [vmem:[#allocation5 + $0x318] sm:$0xff]
    %v275 = vld [vmem:[#allocation5 + $0x320] sm:$0xff]
    %v276 = vld [vmem:[#allocation5 + $0x328] sm:$0xff]
    %v277 = vld [vmem:[#allocation5 + $0x330] sm:$0xff]
    %v278 = vld [vmem:[#allocation5 + $0x338] sm:$0xff]
    %v279 = vld [vmem:[#allocation5 + $0x340] sm:$0xff]
    %v280 = vld [vmem:[#allocation5 + $0x348] sm:$0xff]
    %v281 = vld [vmem:[#allocation5 + $0x350] sm:$0xff]
    %v282 = vld [vmem:[#allocation5 + $0x358] sm:$0xff]
    %v283 = vld [vmem:[#allocation5 + $0x360] sm:$0xff]
    %v284 = vld [vmem:[#allocation5 + $0x368] sm:$0xff]
    %v285 = vld [vmem:[#allocation5 + $0x370] sm:$0xff]
    %v286 = vld [vmem:[#allocation5 + $0x378] sm:$0xff]
    %v287 = vld [vmem:[#allocation5 + $0x380] sm:$0xff]
    %v288 = vld [vmem:[#allocation5 + $0x388] sm:$0xff]
    %v289 = vld [vmem:[#allocation5 + $0x390] sm:$0xff]
    %v290 = vld [vmem:[#allocation5 + $0x398] sm:$0xff]
    %v291 = vld [vmem:[#allocation5 + $0x3a0] sm:$0xff]
    %v292 = vld [vmem:[#allocation5 + $0x3a8] sm:$0xff]
    %v293 = vld [vmem:[#allocation5 + $0x3b0] sm:$0xff]
    %v294 = vld [vmem:[#allocation5 + $0x3b8] sm:$0xff]
    %v295 = vld [vmem:[#allocation5 + $0x3c0] sm:$0xff]
    %v296 = vld [vmem:[#allocation5 + $0x3c8] sm:$0xff]
    %v297 = vld [vmem:[#allocation5 + $0x3d0] sm:$0xff]
    %v298 = vld [vmem:[#allocation5 + $0x3d8] sm:$0xff]
    %v299 = vld [vmem:[#allocation5 + $0x3e0] sm:$0xff]
    %v300 = vld [vmem:[#allocation5 + $0x3e8] sm:$0xff]
    %v301 = vld [vmem:[#allocation5 + $0x3f0] sm:$0xff]
    %v302 = vld [vmem:[#allocation5 + $0x3f8] sm:$0xff]
    %v303 = vld [vmem:[#allocation5 + $0x400] sm:$0xff]
    %v304 = vld [vmem:[#allocation5 + $0x408] sm:$0xff]
    %v305 = vld [vmem:[#allocation5 + $0x410] sm:$0xff]
    %v306 = vld [vmem:[#allocation5 + $0x418] sm:$0xff]
    %v307 = vld [vmem:[#allocation5 + $0x420] sm:$0xff]
    %v308 = vld [vmem:[#allocation5 + $0x428] sm:$0xff]
    %v309 = vld [vmem:[#allocation5 + $0x430] sm:$0xff]
    %v310 = vld [vmem:[#allocation5 + $0x438] sm:$0xff]
    %v311 = vld [vmem:[#allocation5 + $0x440] sm:$0xff]
    %v312 = vld [vmem:[#allocation5 + $0x448] sm:$0xff]
    %v313 = vld [vmem:[#allocation5 + $0x450] sm:$0xff]
    %v314 = vld [vmem:[#allocation5 + $0x458] sm:$0xff]
    %v315 = vld [vmem:[#allocation5 + $0x460] sm:$0xff]
    %v316 = vld [vmem:[#allocation5 + $0x468] sm:$0xff]
    %v317 = vld [vmem:[#allocation5 + $0x470] sm:$0xff]
    %v318 = vld [vmem:[#allocation5 + $0x478] sm:$0xff]
    %v319 = vld [vmem:[#allocation5 + $0x480] sm:$0xff]
    %v320 = vld [vmem:[#allocation5 + $0x488] sm:$0xff]
    %v321 = vld [vmem:[#allocation5 + $0x490] sm:$0xff]
    %v322 = vld [vmem:[#allocation5 + $0x498] sm:$0xff]
    %v323 = vld [vmem:[#allocation5 + $0x4a0] sm:$0xff]
    %v324 = vld [vmem:[#allocation5 + $0x4a8] sm:$0xff]
    %v325 = vld [vmem:[#allocation5 + $0x4b0] sm:$0xff]
    %v326 = vld [vmem:[#allocation5 + $0x4b8] sm:$0xff]
    %v327 = vld [vmem:[#allocation5 + $0x4c0] sm:$0xff]
    %v328 = vld [vmem:[#allocation5 + $0x4c8] sm:$0xff]
    %v329 = vld [vmem:[#allocation5 + $0x4d0] sm:$0xff]
    %v330 = vld [vmem:[#allocation5 + $0x4d8] sm:$0xff]
    %v331 = vld [vmem:[#allocation5 + $0x4e0] sm:$0xff]
    %v332 = vld [vmem:[#allocation5 + $0x4e8] sm:$0xff]
    %v333 = vld [vmem:[#allocation5 + $0x4f0] sm:$0xff]
    %v334 = vld [vmem:[#allocation5 + $0x4f8] sm:$0xff]
    %v335 = vld [vmem:[#allocation5 + $0x500] sm:$0xff]
    %v336 = vld [vmem:[#allocation5 + $0x508] sm:$0xff]
    %v337 = vld [vmem:[#allocation5 + $0x510] sm:$0xff]
    %v338 = vld [vmem:[#allocation5 + $0x518] sm:$0xff]
    %v339 = vld [vmem:[#allocation5 + $0x520] sm:$0xff]
    %v340 = vld [vmem:[#allocation5 + $0x528] sm:$0xff]
    %v341 = vld [vmem:[#allocation5 + $0x530] sm:$0xff]
    %v342 = vld [vmem:[#allocation5 + $0x538] sm:$0xff]
    %v343 = vld [vmem:[#allocation5 + $0x540] sm:$0xff]
    %v344 = vld [vmem:[#allocation5 + $0x548] sm:$0xff]
    %v345 = vld [vmem:[#allocation5 + $0x550] sm:$0xff]
    %v346 = vld [vmem:[#allocation5 + $0x558] sm:$0xff]
    %v347 = vld [vmem:[#allocation5 + $0x560] sm:$0xff]
    %v348 = vld [vmem:[#allocation5 + $0x568] sm:$0xff]
    %v349 = vld [vmem:[#allocation5 + $0x570] sm:$0xff]
    %v350 = vld [vmem:[#allocation5 + $0x578] sm:$0xff]
    %v351 = vld [vmem:[#allocation5 + $0x580] sm:$0xff]
    %v352 = vld [vmem:[#allocation5 + $0x588] sm:$0xff]
    %v353 = vld [vmem:[#allocation5 + $0x590] sm:$0xff]
    %v354 = vld [vmem:[#allocation5 + $0x598] sm:$0xff]
    %v355 = vld [vmem:[#allocation5 + $0x5a0] sm:$0xff]
    %v356 = vld [vmem:[#allocation5 + $0x5a8] sm:$0xff]
    %v357 = vld [vmem:[#allocation5 + $0x5b0] sm:$0xff]
    %v358 = vld [vmem:[#allocation5 + $0x5b8] sm:$0xff]
    %v359 = vld [vmem:[#allocation5 + $0x5c0] sm:$0xff]
    %v360 = vld [vmem:[#allocation5 + $0x5c8] sm:$0xff]
    %v361 = vld [vmem:[#allocation5 + $0x5d0] sm:$0xff]
    %v362 = vld [vmem:[#allocation5 + $0x5d8] sm:$0xff]
    %v363 = vld [vmem:[#allocation5 + $0x5e0] sm:$0xff]
    %v364 = vld [vmem:[#allocation5 + $0x5e8] sm:$0xff]
    %v365 = vld [vmem:[#allocation5 + $0x5f0] sm:$0xff]
    %v366 = vld [vmem:[#allocation5 + $0x5f8] sm:$0xff]
    %v367 = vld [vmem:[#allocation5 + $0x600] sm:$0xff]
    %v368 = vld [vmem:[#allocation5 + $0x608] sm:$0xff]
    %v369 = vld [vmem:[#allocation5 + $0x610] sm:$0xff]
    %v370 = vld [vmem:[#allocation5 + $0x618] sm:$0xff]
    %v371 = vld [vmem:[#allocation5 + $0x620] sm:$0xff]
    %v372 = vld [vmem:[#allocation5 + $0x628] sm:$0xff]
    %v373 = vld [vmem:[#allocation5 + $0x630] sm:$0xff]
    %v374 = vld [vmem:[#allocation5 + $0x638] sm:$0xff]
    %v375 = vld [vmem:[#allocation5 + $0x640] sm:$0xff]
    %v376 = vld [vmem:[#allocation5 + $0x648] sm:$0xff]
    %v377 = vld [vmem:[#allocation5 + $0x650] sm:$0xff]
    %v378 = vld [vmem:[#allocation5 + $0x658] sm:$0xff]
    %v379 = vld [vmem:[#allocation5 + $0x660] sm:$0xff]
    %v380 = vld [vmem:[#allocation5 + $0x668] sm:$0xff]
    %v381 = vld [vmem:[#allocation5 + $0x670] sm:$0xff]
    %v382 = vld [vmem:[#allocation5 + $0x678] sm:$0xff]
    %v383 = vld [vmem:[#allocation5 + $0x680] sm:$0xff]
    %v384 = vld [vmem:[#allocation5 + $0x688] sm:$0xff]
    %v385 = vld [vmem:[#allocation5 + $0x690] sm:$0xff]
    %v386 = vld [vmem:[#allocation5 + $0x698] sm:$0xff]
    %v387 = vld [vmem:[#allocation5 + $0x6a0] sm:$0xff]
    %v388 = vld [vmem:[#allocation5 + $0x6a8] sm:$0xff]
    %v389 = vld [vmem:[#allocation5 + $0x6b0] sm:$0xff]
    %v390 = vld [vmem:[#allocation5 + $0x6b8] sm:$0xff]
    %v391 = vld [vmem:[#allocation5 + $0x6c0] sm:$0xff]
    %v392 = vld [vmem:[#allocation5 + $0x6c8] sm:$0xff]
    %v393 = vld [vmem:[#allocation5 + $0x6d0] sm:$0xff]
    %v394 = vld [vmem:[#allocation5 + $0x6d8] sm:$0xff]
    %v395 = vld [vmem:[#allocation5 + $0x6e0] sm:$0xff]
    %v396 = vld [vmem:[#allocation5 + $0x6e8] sm:$0xff]
    %v397 = vld [vmem:[#allocation5 + $0x6f0] sm:$0xff]
    %v398 = vld [vmem:[#allocation5 + $0x6f8] sm:$0xff]
    %v399 = vld [vmem:[#allocation5 + $0x700] sm:$0xff]
    %v400 = vld [vmem:[#allocation5 + $0x708] sm:$0xff]
    %v401 = vld [vmem:[#allocation5 + $0x710] sm:$0xff]
    %v402 = vld [vmem:[#allocation5 + $0x718] sm:$0xff]
    %v403 = vld [vmem:[#allocation5 + $0x720] sm:$0xff]
    %v404 = vld [vmem:[#allocation5 + $0x728] sm:$0xff]
    %v405 = vld [vmem:[#allocation5 + $0x730] sm:$0xff]
    %v406 = vld [vmem:[#allocation5 + $0x738] sm:$0xff]
    %v407 = vld [vmem:[#allocation5 + $0x740] sm:$0xff]
    %v408 = vld [vmem:[#allocation5 + $0x748] sm:$0xff]
    %v409 = vld [vmem:[#allocation5 + $0x750] sm:$0xff]
    %v410 = vld [vmem:[#allocation5 + $0x758] sm:$0xff]
    %v411 = vld [vmem:[#allocation5 + $0x760] sm:$0xff]
    %v412 = vld [vmem:[#allocation5 + $0x768] sm:$0xff]
    %v413 = vld [vmem:[#allocation5 + $0x770] sm:$0xff]
    %v414 = vld [vmem:[#allocation5 + $0x778] sm:$0xff]
    %v415 = vld [vmem:[#allocation5 + $0x780] sm:$0xff]
    %v416 = vld [vmem:[#allocation5 + $0x788] sm:$0xff]
    %v417 = vld [vmem:[#allocation5 + $0x790] sm:$0xff]
    %v418 = vld [vmem:[#allocation5 + $0x798] sm:$0xff]
    %v419 = vld [vmem:[#allocation5 + $0x7a0] sm:$0xff]
    %v420 = vld [vmem:[#allocation5 + $0x7a8] sm:$0xff]
    %v421 = vld [vmem:[#allocation5 + $0x7b0] sm:$0xff]
    %v422 = vld [vmem:[#allocation5 + $0x7b8] sm:$0xff]
    %v423 = vld [vmem:[#allocation5 + $0x7c0] sm:$0xff]
    %v424 = vld [vmem:[#allocation5 + $0x7c8] sm:$0xff]
    %v425 = vld [vmem:[#allocation5 + $0x7d0] sm:$0xff]
    %v426 = vld [vmem:[#allocation5 + $0x7d8] sm:$0xff]
    %v427 = vld [vmem:[#allocation5 + $0x7e0] sm:$0xff]
    %v428 = vld [vmem:[#allocation5 + $0x7e8] sm:$0xff]
    %v429 = vld [vmem:[#allocation5 + $0x7f0] sm:$0xff]
    %v430 = vld [vmem:[#allocation5 + $0x7f8] sm:$0xff]
    %v431 = vld [vmem:[#allocation7] sm:$0xf]
    %v433 = vperm.slane %v431, 0
    %v434 = vperm.slane %v431, 1
    %v435 = vperm.slane %v431, 2
    %v436 = vperm.slane %v431, 3
    %v697 = vunpack.c.l.b16 %v175
    %v698 = vunpack.c.h.b16 %v175
    %v699 = vunpack.c.l.b16 %v176
    %v700 = vunpack.c.h.b16 %v176
    %v701 = vunpack.c.l.b16 %v177
    %v702 = vunpack.c.h.b16 %v177
    %v703 = vunpack.c.l.b16 %v178
    %v704 = vunpack.c.h.b16 %v178
    %v705 = vunpack.c.l.b16 %v179
    %v706 = vunpack.c.h.b16 %v179
    %v707 = vunpack.c.l.b16 %v180
    %v708 = vunpack.c.h.b16 %v180
    %v709 = vunpack.c.l.b16 %v181
    %v710 = vunpack.c.h.b16 %v181
    %v711 = vunpack.c.l.b16 %v182
    %v712 = vunpack.c.h.b16 %v182
    %v713 = vunpack.c.l.b16 %v183
    %v714 = vunpack.c.h.b16 %v183
    %v715 = vunpack.c.l.b16 %v184
    %v716 = vunpack.c.h.b16 %v184
    %v717 = vunpack.c.l.b16 %v185
    %v718 = vunpack.c.h.b16 %v185
    %v719 = vunpack.c.l.b16 %v186
    %v720 = vunpack.c.h.b16 %v186
    %v721 = vunpack.c.l.b16 %v187
    %v722 = vunpack.c.h.b16 %v187
    %v723 = vunpack.c.l.b16 %v188
    %v724 = vunpack.c.h.b16 %v188
    %v725 = vunpack.c.l.b16 %v189
    %v726 = vunpack.c.h.b16 %v189
    %v727 = vunpack.c.l.b16 %v190
    %v728 = vunpack.c.h.b16 %v190
    %v729 = vunpack.c.l.b16 %v191
    %v730 = vunpack.c.h.b16 %v191
    %v731 = vunpack.c.l.b16 %v192
    %v732 = vunpack.c.h.b16 %v192
    %v733 = vunpack.c.l.b16 %v193
    %v734 = vunpack.c.h.b16 %v193
    %v735 = vunpack.c.l.b16 %v194
    %v736 = vunpack.c.h.b16 %v194
    %v737 = vunpack.c.l.b16 %v195
    %v738 = vunpack.c.h.b16 %v195
    %v739 = vunpack.c.l.b16 %v196
    %v740 = vunpack.c.h.b16 %v196
    %v741 = vunpack.c.l.b16 %v197
    %v742 = vunpack.c.h.b16 %v197
    %v743 = vunpack.c.l.b16 %v198
    %v744 = vunpack.c.h.b16 %v198
    %v745 = vunpack.c.l.b16 %v199
    %v746 = vunpack.c.h.b16 %v199
    %v747 = vunpack.c.l.b16 %v200
    %v748 = vunpack.c.h.b16 %v200
    %v749 = vunpack.c.l.b16 %v201
    %v750 = vunpack.c.h.b16 %v201
    %v751 = vunpack.c.l.b16 %v202
    %v752 = vunpack.c.h.b16 %v202
    %v753 = vunpack.c.l.b16 %v203
    %v754 = vunpack.c.h.b16 %v203
    %v755 = vunpack.c.l.b16 %v204
    %v756 = vunpack.c.h.b16 %v204
    %v757 = vunpack.c.l.b16 %v205
    %v758 = vunpack.c.h.b16 %v205
    %v759 = vunpack.c.l.b16 %v206
    %v760 = vunpack.c.h.b16 %v206
    %v761 = vunpack.c.l.b16 %v207
    %v762 = vunpack.c.h.b16 %v207
    %v763 = vunpack.c.l.b16 %v208
    %v764 = vunpack.c.h.b16 %v208
    %v765 = vunpack.c.l.b16 %v209
    %v766 = vunpack.c.h.b16 %v209
    %v767 = vunpack.c.l.b16 %v210
    %v768 = vunpack.c.h.b16 %v210
    %v769 = vunpack.c.l.b16 %v211
    %v770 = vunpack.c.h.b16 %v211
    %v771 = vunpack.c.l.b16 %v212
    %v772 = vunpack.c.h.b16 %v212
    %v773 = vunpack.c.l.b16 %v213
    %v774 = vunpack.c.h.b16 %v213
    %v775 = vunpack.c.l.b16 %v214
    %v776 = vunpack.c.h.b16 %v214
    %v777 = vunpack.c.l.b16 %v215
    %v778 = vunpack.c.h.b16 %v215
    %v779 = vunpack.c.l.b16 %v216
    %v780 = vunpack.c.h.b16 %v216
    %v781 = vunpack.c.l.b16 %v217
    %v782 = vunpack.c.h.b16 %v217
    %v783 = vunpack.c.l.b16 %v218
    %v784 = vunpack.c.h.b16 %v218
    %v785 = vunpack.c.l.b16 %v219
    %v786 = vunpack.c.h.b16 %v219
    %v787 = vunpack.c.l.b16 %v220
    %v788 = vunpack.c.h.b16 %v220
    %v789 = vunpack.c.l.b16 %v221
    %v790 = vunpack.c.h.b16 %v221
    %v791 = vunpack.c.l.b16 %v222
    %v792 = vunpack.c.h.b16 %v222
    %v793 = vunpack.c.l.b16 %v223
    %v794 = vunpack.c.h.b16 %v223
    %v795 = vunpack.c.l.b16 %v224
    %v796 = vunpack.c.h.b16 %v224
    %v797 = vunpack.c.l.b16 %v225
    %v798 = vunpack.c.h.b16 %v225
    %v799 = vunpack.c.l.b16 %v226
    %v800 = vunpack.c.h.b16 %v226
    %v801 = vunpack.c.l.b16 %v227
    %v802 = vunpack.c.h.b16 %v227
    %v803 = vunpack.c.l.b16 %v228
    %v804 = vunpack.c.h.b16 %v228
    %v805 = vunpack.c.l.b16 %v229
    %v806 = vunpack.c.h.b16 %v229
    %v807 = vunpack.c.l.b16 %v230
    %v808 = vunpack.c.h.b16 %v230
    %v809 = vunpack.c.l.b16 %v231
    %v810 = vunpack.c.h.b16 %v231
    %v811 = vunpack.c.l.b16 %v232
    %v812 = vunpack.c.h.b16 %v232
    %v813 = vunpack.c.l.b16 %v233
    %v814 = vunpack.c.h.b16 %v233
    %v815 = vunpack.c.l.b16 %v234
    %v816 = vunpack.c.h.b16 %v234
    %v817 = vunpack.c.l.b16 %v235
    %v818 = vunpack.c.h.b16 %v235
    %v819 = vunpack.c.l.b16 %v236
    %v820 = vunpack.c.h.b16 %v236
    %v821 = vunpack.c.l.b16 %v237
    %v822 = vunpack.c.h.b16 %v237
    %v823 = vunpack.c.l.b16 %v238
    %v824 = vunpack.c.h.b16 %v238
    %v825 = vunpack.c.l.b16 %v239
    %v826 = vunpack.c.h.b16 %v239
    %v827 = vunpack.c.l.b16 %v240
    %v828 = vunpack.c.h.b16 %v240
    %v829 = vunpack.c.l.b16 %v241
    %v830 = vunpack.c.h.b16 %v241
    %v831 = vunpack.c.l.b16 %v242
    %v832 = vunpack.c.h.b16 %v242
    %v833 = vunpack.c.l.b16 %v243
    %v834 = vunpack.c.h.b16 %v243
    %v835 = vunpack.c.l.b16 %v244
    %v836 = vunpack.c.h.b16 %v244
    %v837 = vunpack.c.l.b16 %v245
    %v838 = vunpack.c.h.b16 %v245
    %v839 = vunpack.c.l.b16 %v246
    %v840 = vunpack.c.h.b16 %v246
    %v841 = vunpack.c.l.b16 %v247
    %v842 = vunpack.c.h.b16 %v247
    %v843 = vunpack.c.l.b16 %v248
    %v844 = vunpack.c.h.b16 %v248
    %v845 = vunpack.c.l.b16 %v249
    %v846 = vunpack.c.h.b16 %v249
    %v847 = vunpack.c.l.b16 %v250
    %v848 = vunpack.c.h.b16 %v250
    %v849 = vunpack.c.l.b16 %v251
    %v850 = vunpack.c.h.b16 %v251
    %v851 = vunpack.c.l.b16 %v252
    %v852 = vunpack.c.h.b16 %v252
    %v853 = vunpack.c.l.b16 %v253
    %v854 = vunpack.c.h.b16 %v253
    %v855 = vunpack.c.l.b16 %v254
    %v856 = vunpack.c.h.b16 %v254
    %v857 = vunpack.c.l.b16 %v255
    %v858 = vunpack.c.h.b16 %v255
    %v859 = vunpack.c.l.b16 %v256
    %v860 = vunpack.c.h.b16 %v256
    %v861 = vunpack.c.l.b16 %v257
    %v862 = vunpack.c.h.b16 %v257
    %v863 = vunpack.c.l.b16 %v258
    %v864 = vunpack.c.h.b16 %v258
    %v865 = vunpack.c.l.b16 %v259
    %v866 = vunpack.c.h.b16 %v259
    %v867 = vunpack.c.l.b16 %v260
    %v868 = vunpack.c.h.b16 %v260
    %v869 = vunpack.c.l.b16 %v261
    %v870 = vunpack.c.h.b16 %v261
    %v871 = vunpack.c.l.b16 %v262
    %v872 = vunpack.c.h.b16 %v262
    %v873 = vunpack.c.l.b16 %v263
    %v874 = vunpack.c.h.b16 %v263
    %v875 = vunpack.c.l.b16 %v264
    %v876 = vunpack.c.h.b16 %v264
    %v877 = vunpack.c.l.b16 %v265
    %v878 = vunpack.c.h.b16 %v265
    %v879 = vunpack.c.l.b16 %v266
    %v880 = vunpack.c.h.b16 %v266
    %v881 = vunpack.c.l.b16 %v267
    %v882 = vunpack.c.h.b16 %v267
    %v883 = vunpack.c.l.b16 %v268
    %v884 = vunpack.c.h.b16 %v268
    %v885 = vunpack.c.l.b16 %v269
    %v886 = vunpack.c.h.b16 %v269
    %v887 = vunpack.c.l.b16 %v270
    %v888 = vunpack.c.h.b16 %v270
    %v889 = vunpack.c.l.b16 %v271
    %v890 = vunpack.c.h.b16 %v271
    %v891 = vunpack.c.l.b16 %v272
    %v892 = vunpack.c.h.b16 %v272
    %v893 = vunpack.c.l.b16 %v273
    %v894 = vunpack.c.h.b16 %v273
    %v895 = vunpack.c.l.b16 %v274
    %v896 = vunpack.c.h.b16 %v274
    %v897 = vunpack.c.l.b16 %v275
    %v898 = vunpack.c.h.b16 %v275
    %v899 = vunpack.c.l.b16 %v276
    %v900 = vunpack.c.h.b16 %v276
    %v901 = vunpack.c.l.b16 %v277
    %v902 = vunpack.c.h.b16 %v277
    %v903 = vunpack.c.l.b16 %v278
    %v904 = vunpack.c.h.b16 %v278
    %v905 = vunpack.c.l.b16 %v279
    %v906 = vunpack.c.h.b16 %v279
    %v907 = vunpack.c.l.b16 %v280
    %v908 = vunpack.c.h.b16 %v280
    %v909 = vunpack.c.l.b16 %v281
    %v910 = vunpack.c.h.b16 %v281
    %v911 = vunpack.c.l.b16 %v282
    %v912 = vunpack.c.h.b16 %v282
    %v913 = vunpack.c.l.b16 %v283
    %v914 = vunpack.c.h.b16 %v283
    %v915 = vunpack.c.l.b16 %v284
    %v916 = vunpack.c.h.b16 %v284
    %v917 = vunpack.c.l.b16 %v285
    %v918 = vunpack.c.h.b16 %v285
    %v919 = vunpack.c.l.b16 %v286
    %v920 = vunpack.c.h.b16 %v286
    %v921 = vunpack.c.l.b16 %v287
    %v922 = vunpack.c.h.b16 %v287
    %v923 = vunpack.c.l.b16 %v288
    %v924 = vunpack.c.h.b16 %v288
    %v925 = vunpack.c.l.b16 %v289
    %v926 = vunpack.c.h.b16 %v289
    %v927 = vunpack.c.l.b16 %v290
    %v928 = vunpack.c.h.b16 %v290
    %v929 = vunpack.c.l.b16 %v291
    %v930 = vunpack.c.h.b16 %v291
    %v931 = vunpack.c.l.b16 %v292
    %v932 = vunpack.c.h.b16 %v292
    %v933 = vunpack.c.l.b16 %v293
    %v934 = vunpack.c.h.b16 %v293
    %v935 = vunpack.c.l.b16 %v294
    %v936 = vunpack.c.h.b16 %v294
    %v937 = vunpack.c.l.b16 %v295
    %v938 = vunpack.c.h.b16 %v295
    %v939 = vunpack.c.l.b16 %v296
    %v940 = vunpack.c.h.b16 %v296
    %v941 = vunpack.c.l.b16 %v297
    %v942 = vunpack.c.h.b16 %v297
    %v943 = vunpack.c.l.b16 %v298
    %v944 = vunpack.c.h.b16 %v298
    %v945 = vunpack.c.l.b16 %v299
    %v946 = vunpack.c.h.b16 %v299
    %v947 = vunpack.c.l.b16 %v300
    %v948 = vunpack.c.h.b16 %v300
    %v949 = vunpack.c.l.b16 %v301
    %v950 = vunpack.c.h.b16 %v301
    %v951 = vunpack.c.l.b16 %v302
    %v952 = vunpack.c.h.b16 %v302
    %v953 = vunpack.c.l.b16 %v303
    %v954 = vunpack.c.h.b16 %v303
    %v955 = vunpack.c.l.b16 %v304
    %v956 = vunpack.c.h.b16 %v304
    %v957 = vunpack.c.l.b16 %v305
    %v958 = vunpack.c.h.b16 %v305
    %v959 = vunpack.c.l.b16 %v306
    %v960 = vunpack.c.h.b16 %v306
    %v961 = vunpack.c.l.b16 %v307
    %v962 = vunpack.c.h.b16 %v307
    %v963 = vunpack.c.l.b16 %v308
    %v964 = vunpack.c.h.b16 %v308
    %v965 = vunpack.c.l.b16 %v309
    %v966 = vunpack.c.h.b16 %v309
    %v967 = vunpack.c.l.b16 %v310
    %v968 = vunpack.c.h.b16 %v310
    %v969 = vunpack.c.l.b16 %v311
    %v970 = vunpack.c.h.b16 %v311
    %v971 = vunpack.c.l.b16 %v312
    %v972 = vunpack.c.h.b16 %v312
    %v973 = vunpack.c.l.b16 %v313
    %v974 = vunpack.c.h.b16 %v313
    %v975 = vunpack.c.l.b16 %v314
    %v976 = vunpack.c.h.b16 %v314
    %v977 = vunpack.c.l.b16 %v315
    %v978 = vunpack.c.h.b16 %v315
    %v979 = vunpack.c.l.b16 %v316
    %v980 = vunpack.c.h.b16 %v316
    %v981 = vunpack.c.l.b16 %v317
    %v982 = vunpack.c.h.b16 %v317
    %v983 = vunpack.c.l.b16 %v318
    %v984 = vunpack.c.h.b16 %v318
    %v985 = vunpack.c.l.b16 %v319
    %v986 = vunpack.c.h.b16 %v319
    %v987 = vunpack.c.l.b16 %v320
    %v988 = vunpack.c.h.b16 %v320
    %v989 = vunpack.c.l.b16 %v321
    %v990 = vunpack.c.h.b16 %v321
    %v991 = vunpack.c.l.b16 %v322
    %v992 = vunpack.c.h.b16 %v322
    %v993 = vunpack.c.l.b16 %v323
    %v994 = vunpack.c.h.b16 %v323
    %v995 = vunpack.c.l.b16 %v324
    %v996 = vunpack.c.h.b16 %v324
    %v997 = vunpack.c.l.b16 %v325
    %v998 = vunpack.c.h.b16 %v325
    %v999 = vunpack.c.l.b16 %v326
    %v1000 = vunpack.c.h.b16 %v326
    %v1001 = vunpack.c.l.b16 %v327
    %v1002 = vunpack.c.h.b16 %v327
    %v1003 = vunpack.c.l.b16 %v328
    %v1004 = vunpack.c.h.b16 %v328
    %v1005 = vunpack.c.l.b16 %v329
    %v1006 = vunpack.c.h.b16 %v329
    %v1007 = vunpack.c.l.b16 %v330
    %v1008 = vunpack.c.h.b16 %v330
    %v1009 = vunpack.c.l.b16 %v331
    %v1010 = vunpack.c.h.b16 %v331
    %v1011 = vunpack.c.l.b16 %v332
    %v1012 = vunpack.c.h.b16 %v332
    %v1013 = vunpack.c.l.b16 %v333
    %v1014 = vunpack.c.h.b16 %v333
    %v1015 = vunpack.c.l.b16 %v334
    %v1016 = vunpack.c.h.b16 %v334
    %v1017 = vunpack.c.l.b16 %v335
    %v1018 = vunpack.c.h.b16 %v335
    %v1019 = vunpack.c.l.b16 %v336
    %v1020 = vunpack.c.h.b16 %v336
    %v1021 = vunpack.c.l.b16 %v337
    %v1022 = vunpack.c.h.b16 %v337
    %v1023 = vunpack.c.l.b16 %v338
    %v1024 = vunpack.c.h.b16 %v338
    %v1025 = vunpack.c.l.b16 %v339
    %v1026 = vunpack.c.h.b16 %v339
    %v1027 = vunpack.c.l.b16 %v340
    %v1028 = vunpack.c.h.b16 %v340
    %v1029 = vunpack.c.l.b16 %v341
    %v1030 = vunpack.c.h.b16 %v341
    %v1031 = vunpack.c.l.b16 %v342
    %v1032 = vunpack.c.h.b16 %v342
    %v1033 = vunpack.c.l.b16 %v343
    %v1034 = vunpack.c.h.b16 %v343
    %v1035 = vunpack.c.l.b16 %v344
    %v1036 = vunpack.c.h.b16 %v344
    %v1037 = vunpack.c.l.b16 %v345
    %v1038 = vunpack.c.h.b16 %v345
    %v1039 = vunpack.c.l.b16 %v346
    %v1040 = vunpack.c.h.b16 %v346
    %v1041 = vunpack.c.l.b16 %v347
    %v1042 = vunpack.c.h.b16 %v347
    %v1043 = vunpack.c.l.b16 %v348
    %v1044 = vunpack.c.h.b16 %v348
    %v1045 = vunpack.c.l.b16 %v349
    %v1046 = vunpack.c.h.b16 %v349
    %v1047 = vunpack.c.l.b16 %v350
    %v1048 = vunpack.c.h.b16 %v350
    %v1049 = vunpack.c.l.b16 %v351
    %v1050 = vunpack.c.h.b16 %v351
    %v1051 = vunpack.c.l.b16 %v352
    %v1052 = vunpack.c.h.b16 %v352
    %v1053 = vunpack.c.l.b16 %v353
    %v1054 = vunpack.c.h.b16 %v353
    %v1055 = vunpack.c.l.b16 %v354
    %v1056 = vunpack.c.h.b16 %v354
    %v1057 = vunpack.c.l.b16 %v355
    %v1058 = vunpack.c.h.b16 %v355
    %v1059 = vunpack.c.l.b16 %v356
    %v1060 = vunpack.c.h.b16 %v356
    %v1061 = vunpack.c.l.b16 %v357
    %v1062 = vunpack.c.h.b16 %v357
    %v1063 = vunpack.c.l.b16 %v358
    %v1064 = vunpack.c.h.b16 %v358
    %v1065 = vunpack.c.l.b16 %v359
    %v1066 = vunpack.c.h.b16 %v359
    %v1067 = vunpack.c.l.b16 %v360
    %v1068 = vunpack.c.h.b16 %v360
    %v1069 = vunpack.c.l.b16 %v361
    %v1070 = vunpack.c.h.b16 %v361
    %v1071 = vunpack.c.l.b16 %v362
    %v1072 = vunpack.c.h.b16 %v362
    %v1073 = vunpack.c.l.b16 %v363
    %v1074 = vunpack.c.h.b16 %v363
    %v1075 = vunpack.c.l.b16 %v364
    %v1076 = vunpack.c.h.b16 %v364
    %v1077 = vunpack.c.l.b16 %v365
    %v1078 = vunpack.c.h.b16 %v365
    %v1079 = vunpack.c.l.b16 %v366
    %v1080 = vunpack.c.h.b16 %v366
    %v1081 = vunpack.c.l.b16 %v367
    %v1082 = vunpack.c.h.b16 %v367
    %v1083 = vunpack.c.l.b16 %v368
    %v1084 = vunpack.c.h.b16 %v368
    %v1085 = vunpack.c.l.b16 %v369
    %v1086 = vunpack.c.h.b16 %v369
    %v1087 = vunpack.c.l.b16 %v370
    %v1088 = vunpack.c.h.b16 %v370
    %v1089 = vunpack.c.l.b16 %v371
    %v1090 = vunpack.c.h.b16 %v371
    %v1091 = vunpack.c.l.b16 %v372
    %v1092 = vunpack.c.h.b16 %v372
    %v1093 = vunpack.c.l.b16 %v373
    %v1094 = vunpack.c.h.b16 %v373
    %v1095 = vunpack.c.l.b16 %v374
    %v1096 = vunpack.c.h.b16 %v374
    %v1097 = vunpack.c.l.b16 %v375
    %v1098 = vunpack.c.h.b16 %v375
    %v1099 = vunpack.c.l.b16 %v376
    %v1100 = vunpack.c.h.b16 %v376
    %v1101 = vunpack.c.l.b16 %v377
    %v1102 = vunpack.c.h.b16 %v377
    %v1103 = vunpack.c.l.b16 %v378
    %v1104 = vunpack.c.h.b16 %v378
    %v1105 = vunpack.c.l.b16 %v379
    %v1106 = vunpack.c.h.b16 %v379
    %v1107 = vunpack.c.l.b16 %v380
    %v1108 = vunpack.c.h.b16 %v380
    %v1109 = vunpack.c.l.b16 %v381
    %v1110 = vunpack.c.h.b16 %v381
    %v1111 = vunpack.c.l.b16 %v382
    %v1112 = vunpack.c.h.b16 %v382
    %v1113 = vunpack.c.l.b16 %v383
    %v1114 = vunpack.c.h.b16 %v383
    %v1115 = vunpack.c.l.b16 %v384
    %v1116 = vunpack.c.h.b16 %v384
    %v1117 = vunpack.c.l.b16 %v385
    %v1118 = vunpack.c.h.b16 %v385
    %v1119 = vunpack.c.l.b16 %v386
    %v1120 = vunpack.c.h.b16 %v386
    %v1121 = vunpack.c.l.b16 %v387
    %v1122 = vunpack.c.h.b16 %v387
    %v1123 = vunpack.c.l.b16 %v388
    %v1124 = vunpack.c.h.b16 %v388
    %v1125 = vunpack.c.l.b16 %v389
    %v1126 = vunpack.c.h.b16 %v389
    %v1127 = vunpack.c.l.b16 %v390
    %v1128 = vunpack.c.h.b16 %v390
    %v1129 = vunpack.c.l.b16 %v391
    %v1130 = vunpack.c.h.b16 %v391
    %v1131 = vunpack.c.l.b16 %v392
    %v1132 = vunpack.c.h.b16 %v392
    %v1133 = vunpack.c.l.b16 %v393
    %v1134 = vunpack.c.h.b16 %v393
    %v1135 = vunpack.c.l.b16 %v394
    %v1136 = vunpack.c.h.b16 %v394
    %v1137 = vunpack.c.l.b16 %v395
    %v1138 = vunpack.c.h.b16 %v395
    %v1139 = vunpack.c.l.b16 %v396
    %v1140 = vunpack.c.h.b16 %v396
    %v1141 = vunpack.c.l.b16 %v397
    %v1142 = vunpack.c.h.b16 %v397
    %v1143 = vunpack.c.l.b16 %v398
    %v1144 = vunpack.c.h.b16 %v398
    %v1145 = vunpack.c.l.b16 %v399
    %v1146 = vunpack.c.h.b16 %v399
    %v1147 = vunpack.c.l.b16 %v400
    %v1148 = vunpack.c.h.b16 %v400
    %v1149 = vunpack.c.l.b16 %v401
    %v1150 = vunpack.c.h.b16 %v401
    %v1151 = vunpack.c.l.b16 %v402
    %v1152 = vunpack.c.h.b16 %v402
    %v1153 = vunpack.c.l.b16 %v403
    %v1154 = vunpack.c.h.b16 %v403
    %v1155 = vunpack.c.l.b16 %v404
    %v1156 = vunpack.c.h.b16 %v404
    %v1157 = vunpack.c.l.b16 %v405
    %v1158 = vunpack.c.h.b16 %v405
    %v1159 = vunpack.c.l.b16 %v406
    %v1160 = vunpack.c.h.b16 %v406
    %v1161 = vunpack.c.l.b16 %v407
    %v1162 = vunpack.c.h.b16 %v407
    %v1163 = vunpack.c.l.b16 %v408
    %v1164 = vunpack.c.h.b16 %v408
    %v1165 = vunpack.c.l.b16 %v409
    %v1166 = vunpack.c.h.b16 %v409
    %v1167 = vunpack.c.l.b16 %v410
    %v1168 = vunpack.c.h.b16 %v410
    %v1169 = vunpack.c.l.b16 %v411
    %v1170 = vunpack.c.h.b16 %v411
    %v1171 = vunpack.c.l.b16 %v412
    %v1172 = vunpack.c.h.b16 %v412
    %v1173 = vunpack.c.l.b16 %v413
    %v1174 = vunpack.c.h.b16 %v413
    %v1175 = vunpack.c.l.b16 %v414
    %v1176 = vunpack.c.h.b16 %v414
    %v1177 = vunpack.c.l.b16 %v415
    %v1178 = vunpack.c.h.b16 %v415
    %v1179 = vunpack.c.l.b16 %v416
    %v1180 = vunpack.c.h.b16 %v416
    %v1181 = vunpack.c.l.b16 %v417
    %v1182 = vunpack.c.h.b16 %v417
    %v1183 = vunpack.c.l.b16 %v418
    %v1184 = vunpack.c.h.b16 %v418
    %v1185 = vunpack.c.l.b16 %v419
    %v1186 = vunpack.c.h.b16 %v419
    %v1187 = vunpack.c.l.b16 %v420
    %v1188 = vunpack.c.h.b16 %v420
    %v1189 = vunpack.c.l.b16 %v421
    %v1190 = vunpack.c.h.b16 %v421
    %v1191 = vunpack.c.l.b16 %v422
    %v1192 = vunpack.c.h.b16 %v422
    %v1193 = vunpack.c.l.b16 %v423
    %v1194 = vunpack.c.h.b16 %v423
    %v1195 = vunpack.c.l.b16 %v424
    %v1196 = vunpack.c.h.b16 %v424
    %v1197 = vunpack.c.l.b16 %v425
    %v1198 = vunpack.c.h.b16 %v425
    %v1199 = vunpack.c.l.b16 %v426
    %v1200 = vunpack.c.h.b16 %v426
    %v1201 = vunpack.c.l.b16 %v427
    %v1202 = vunpack.c.h.b16 %v427
    %v1203 = vunpack.c.l.b16 %v428
    %v1204 = vunpack.c.h.b16 %v428
    %v1205 = vunpack.c.l.b16 %v429
    %v1206 = vunpack.c.h.b16 %v429
    %v1207 = vunpack.c.l.b16 %v430
    %v1208 = vunpack.c.h.b16 %v430
    %v1209 = vpack.c.b16 %v701, %v697
    %v1210 = vpack.c.b16 %v702, %v698
    %v1211 = vpack.c.b16 %v703, %v699
    %v1212 = vpack.c.b16 %v704, %v700
    %v1213 = vpack.c.b16 %v709, %v705
    %v1214 = vpack.c.b16 %v710, %v706
    %v1215 = vpack.c.b16 %v711, %v707
    %v1216 = vpack.c.b16 %v712, %v708
    %v1217 = vpack.c.b16 %v717, %v713
    %v1218 = vpack.c.b16 %v718, %v714
    %v1219 = vpack.c.b16 %v719, %v715
    %v1220 = vpack.c.b16 %v720, %v716
    %v1221 = vpack.c.b16 %v725, %v721
    %v1222 = vpack.c.b16 %v726, %v722
    %v1223 = vpack.c.b16 %v727, %v723
    %v1224 = vpack.c.b16 %v728, %v724
    %v1225 = vpack.c.b16 %v733, %v729
    %v1226 = vpack.c.b16 %v734, %v730
    %v1227 = vpack.c.b16 %v735, %v731
    %v1228 = vpack.c.b16 %v736, %v732
    %v1229 = vpack.c.b16 %v741, %v737
    %v1230 = vpack.c.b16 %v742, %v738
    %v1231 = vpack.c.b16 %v743, %v739
    %v1232 = vpack.c.b16 %v744, %v740
    %v1233 = vpack.c.b16 %v749, %v745
    %v1234 = vpack.c.b16 %v750, %v746
    %v1235 = vpack.c.b16 %v751, %v747
    %v1236 = vpack.c.b16 %v752, %v748
    %v1237 = vpack.c.b16 %v757, %v753
    %v1238 = vpack.c.b16 %v758, %v754
    %v1239 = vpack.c.b16 %v759, %v755
    %v1240 = vpack.c.b16 %v760, %v756
    %v1241 = vpack.c.b16 %v765, %v761
    %v1242 = vpack.c.b16 %v766, %v762
    %v1243 = vpack.c.b16 %v767, %v763
    %v1244 = vpack.c.b16 %v768, %v764
    %v1245 = vpack.c.b16 %v773, %v769
    %v1246 = vpack.c.b16 %v774, %v770
    %v1247 = vpack.c.b16 %v775, %v771
    %v1248 = vpack.c.b16 %v776, %v772
    %v1249 = vpack.c.b16 %v781, %v777
    %v1250 = vpack.c.b16 %v782, %v778
    %v1251 = vpack.c.b16 %v783, %v779
    %v1252 = vpack.c.b16 %v784, %v780
    %v1253 = vpack.c.b16 %v789, %v785
    %v1254 = vpack.c.b16 %v790, %v786
    %v1255 = vpack.c.b16 %v791, %v787
    %v1256 = vpack.c.b16 %v792, %v788
    %v1257 = vpack.c.b16 %v797, %v793
    %v1258 = vpack.c.b16 %v798, %v794
    %v1259 = vpack.c.b16 %v799, %v795
    %v1260 = vpack.c.b16 %v800, %v796
    %v1261 = vpack.c.b16 %v805, %v801
    %v1262 = vpack.c.b16 %v806, %v802
    %v1263 = vpack.c.b16 %v807, %v803
    %v1264 = vpack.c.b16 %v808, %v804
    %v1265 = vpack.c.b16 %v813, %v809
    %v1266 = vpack.c.b16 %v814, %v810
    %v1267 = vpack.c.b16 %v815, %v811
    %v1268 = vpack.c.b16 %v816, %v812
    %v1269 = vpack.c.b16 %v821, %v817
    %v1270 = vpack.c.b16 %v822, %v818
    %v1271 = vpack.c.b16 %v823, %v819
    %v1272 = vpack.c.b16 %v824, %v820
    %v1273 = vpack.c.b16 %v829, %v825
    %v1274 = vpack.c.b16 %v830, %v826
    %v1275 = vpack.c.b16 %v831, %v827
    %v1276 = vpack.c.b16 %v832, %v828
    %v1277 = vpack.c.b16 %v837, %v833
    %v1278 = vpack.c.b16 %v838, %v834
    %v1279 = vpack.c.b16 %v839, %v835
    %v1280 = vpack.c.b16 %v840, %v836
    %v1281 = vpack.c.b16 %v845, %v841
    %v1282 = vpack.c.b16 %v846, %v842
    %v1283 = vpack.c.b16 %v847, %v843
    %v1284 = vpack.c.b16 %v848, %v844
    %v1285 = vpack.c.b16 %v853, %v849
    %v1286 = vpack.c.b16 %v854, %v850
    %v1287 = vpack.c.b16 %v855, %v851
    %v1288 = vpack.c.b16 %v856, %v852
    %v1289 = vpack.c.b16 %v861, %v857
    %v1290 = vpack.c.b16 %v862, %v858
    %v1291 = vpack.c.b16 %v863, %v859
    %v1292 = vpack.c.b16 %v864, %v860
    %v1293 = vpack.c.b16 %v869, %v865
    %v1294 = vpack.c.b16 %v870, %v866
    %v1295 = vpack.c.b16 %v871, %v867
    %v1296 = vpack.c.b16 %v872, %v868
    %v1297 = vpack.c.b16 %v877, %v873
    %v1298 = vpack.c.b16 %v878, %v874
    %v1299 = vpack.c.b16 %v879, %v875
    %v1300 = vpack.c.b16 %v880, %v876
    %v1301 = vpack.c.b16 %v885, %v881
    %v1302 = vpack.c.b16 %v886, %v882
    %v1303 = vpack.c.b16 %v887, %v883
    %v1304 = vpack.c.b16 %v888, %v884
    %v1305 = vpack.c.b16 %v893, %v889
    %v1306 = vpack.c.b16 %v894, %v890
    %v1307 = vpack.c.b16 %v895, %v891
    %v1308 = vpack.c.b16 %v896, %v892
    %v1309 = vpack.c.b16 %v901, %v897
    %v1310 = vpack.c.b16 %v902, %v898
    %v1311 = vpack.c.b16 %v903, %v899
    %v1312 = vpack.c.b16 %v904, %v900
    %v1313 = vpack.c.b16 %v909, %v905
    %v1314 = vpack.c.b16 %v910, %v906
    %v1315 = vpack.c.b16 %v911, %v907
    %v1316 = vpack.c.b16 %v912, %v908
    %v1317 = vpack.c.b16 %v917, %v913
    %v1318 = vpack.c.b16 %v918, %v914
    %v1319 = vpack.c.b16 %v919, %v915
    %v1320 = vpack.c.b16 %v920, %v916
    %v1321 = vpack.c.b16 %v925, %v921
    %v1322 = vpack.c.b16 %v926, %v922
    %v1323 = vpack.c.b16 %v927, %v923
    %v1324 = vpack.c.b16 %v928, %v924
    %v1325 = vpack.c.b16 %v933, %v929
    %v1326 = vpack.c.b16 %v934, %v930
    %v1327 = vpack.c.b16 %v935, %v931
    %v1328 = vpack.c.b16 %v936, %v932
    %v1329 = vpack.c.b16 %v941, %v937
    %v1330 = vpack.c.b16 %v942, %v938
    %v1331 = vpack.c.b16 %v943, %v939
    %v1332 = vpack.c.b16 %v944, %v940
    %v1333 = vpack.c.b16 %v949, %v945
    %v1334 = vpack.c.b16 %v950, %v946
    %v1335 = vpack.c.b16 %v951, %v947
    %v1336 = vpack.c.b16 %v952, %v948
    %v1337 = vpack.c.b16 %v957, %v953
    %v1338 = vpack.c.b16 %v958, %v954
    %v1339 = vpack.c.b16 %v959, %v955
    %v1340 = vpack.c.b16 %v960, %v956
    %v1341 = vpack.c.b16 %v965, %v961
    %v1342 = vpack.c.b16 %v966, %v962
    %v1343 = vpack.c.b16 %v967, %v963
    %v1344 = vpack.c.b16 %v968, %v964
    %v1345 = vpack.c.b16 %v973, %v969
    %v1346 = vpack.c.b16 %v974, %v970
    %v1347 = vpack.c.b16 %v975, %v971
    %v1348 = vpack.c.b16 %v976, %v972
    %v1349 = vpack.c.b16 %v981, %v977
    %v1350 = vpack.c.b16 %v982, %v978
    %v1351 = vpack.c.b16 %v983, %v979
    %v1352 = vpack.c.b16 %v984, %v980
    %v1353 = vpack.c.b16 %v989, %v985
    %v1354 = vpack.c.b16 %v990, %v986
    %v1355 = vpack.c.b16 %v991, %v987
    %v1356 = vpack.c.b16 %v992, %v988
    %v1357 = vpack.c.b16 %v997, %v993
    %v1358 = vpack.c.b16 %v998, %v994
    %v1359 = vpack.c.b16 %v999, %v995
    %v1360 = vpack.c.b16 %v1000, %v996
    %v1361 = vpack.c.b16 %v1005, %v1001
    %v1362 = vpack.c.b16 %v1006, %v1002
    %v1363 = vpack.c.b16 %v1007, %v1003
    %v1364 = vpack.c.b16 %v1008, %v1004
    %v1365 = vpack.c.b16 %v1013, %v1009
    %v1366 = vpack.c.b16 %v1014, %v1010
    %v1367 = vpack.c.b16 %v1015, %v1011
    %v1368 = vpack.c.b16 %v1016, %v1012
    %v1369 = vpack.c.b16 %v1021, %v1017
    %v1370 = vpack.c.b16 %v1022, %v1018
    %v1371 = vpack.c.b16 %v1023, %v1019
    %v1372 = vpack.c.b16 %v1024, %v1020
    %v1373 = vpack.c.b16 %v1029, %v1025
    %v1374 = vpack.c.b16 %v1030, %v1026
    %v1375 = vpack.c.b16 %v1031, %v1027
    %v1376 = vpack.c.b16 %v1032, %v1028
    %v1377 = vpack.c.b16 %v1037, %v1033
    %v1378 = vpack.c.b16 %v1038, %v1034
    %v1379 = vpack.c.b16 %v1039, %v1035
    %v1380 = vpack.c.b16 %v1040, %v1036
    %v1381 = vpack.c.b16 %v1045, %v1041
    %v1382 = vpack.c.b16 %v1046, %v1042
    %v1383 = vpack.c.b16 %v1047, %v1043
    %v1384 = vpack.c.b16 %v1048, %v1044
    %v1385 = vpack.c.b16 %v1053, %v1049
    %v1386 = vpack.c.b16 %v1054, %v1050
    %v1387 = vpack.c.b16 %v1055, %v1051
    %v1388 = vpack.c.b16 %v1056, %v1052
    %v1389 = vpack.c.b16 %v1061, %v1057
    %v1390 = vpack.c.b16 %v1062, %v1058
    %v1391 = vpack.c.b16 %v1063, %v1059
    %v1392 = vpack.c.b16 %v1064, %v1060
    %v1393 = vpack.c.b16 %v1069, %v1065
    %v1394 = vpack.c.b16 %v1070, %v1066
    %v1395 = vpack.c.b16 %v1071, %v1067
    %v1396 = vpack.c.b16 %v1072, %v1068
    %v1397 = vpack.c.b16 %v1077, %v1073
    %v1398 = vpack.c.b16 %v1078, %v1074
    %v1399 = vpack.c.b16 %v1079, %v1075
    %v1400 = vpack.c.b16 %v1080, %v1076
    %v1401 = vpack.c.b16 %v1085, %v1081
    %v1402 = vpack.c.b16 %v1086, %v1082
    %v1403 = vpack.c.b16 %v1087, %v1083
    %v1404 = vpack.c.b16 %v1088, %v1084
    %v1405 = vpack.c.b16 %v1093, %v1089
    %v1406 = vpack.c.b16 %v1094, %v1090
    %v1407 = vpack.c.b16 %v1095, %v1091
    %v1408 = vpack.c.b16 %v1096, %v1092
    %v1409 = vpack.c.b16 %v1101, %v1097
    %v1410 = vpack.c.b16 %v1102, %v1098
    %v1411 = vpack.c.b16 %v1103, %v1099
    %v1412 = vpack.c.b16 %v1104, %v1100
    %v1413 = vpack.c.b16 %v1109, %v1105
    %v1414 = vpack.c.b16 %v1110, %v1106
    %v1415 = vpack.c.b16 %v1111, %v1107
    %v1416 = vpack.c.b16 %v1112, %v1108
    %v1417 = vpack.c.b16 %v1117, %v1113
    %v1418 = vpack.c.b16 %v1118, %v1114
    %v1419 = vpack.c.b16 %v1119, %v1115
    %v1420 = vpack.c.b16 %v1120, %v1116
    %v1421 = vpack.c.b16 %v1125, %v1121
    %v1422 = vpack.c.b16 %v1126, %v1122
    %v1423 = vpack.c.b16 %v1127, %v1123
    %v1424 = vpack.c.b16 %v1128, %v1124
    %v1425 = vpack.c.b16 %v1133, %v1129
    %v1426 = vpack.c.b16 %v1134, %v1130
    %v1427 = vpack.c.b16 %v1135, %v1131
    %v1428 = vpack.c.b16 %v1136, %v1132
    %v1429 = vpack.c.b16 %v1141, %v1137
    %v1430 = vpack.c.b16 %v1142, %v1138
    %v1431 = vpack.c.b16 %v1143, %v1139
    %v1432 = vpack.c.b16 %v1144, %v1140
    %v1433 = vpack.c.b16 %v1149, %v1145
    %v1434 = vpack.c.b16 %v1150, %v1146
    %v1435 = vpack.c.b16 %v1151, %v1147
    %v1436 = vpack.c.b16 %v1152, %v1148
    %v1437 = vpack.c.b16 %v1157, %v1153
    %v1438 = vpack.c.b16 %v1158, %v1154
    %v1439 = vpack.c.b16 %v1159, %v1155
    %v1440 = vpack.c.b16 %v1160, %v1156
    %v1441 = vpack.c.b16 %v1165, %v1161
    %v1442 = vpack.c.b16 %v1166, %v1162
    %v1443 = vpack.c.b16 %v1167, %v1163
    %v1444 = vpack.c.b16 %v1168, %v1164
    %v1445 = vpack.c.b16 %v1173, %v1169
    %v1446 = vpack.c.b16 %v1174, %v1170
    %v1447 = vpack.c.b16 %v1175, %v1171
    %v1448 = vpack.c.b16 %v1176, %v1172
    %v1449 = vpack.c.b16 %v1181, %v1177
    %v1450 = vpack.c.b16 %v1182, %v1178
    %v1451 = vpack.c.b16 %v1183, %v1179
    %v1452 = vpack.c.b16 %v1184, %v1180
    %v1453 = vpack.c.b16 %v1189, %v1185
    %v1454 = vpack.c.b16 %v1190, %v1186
    %v1455 = vpack.c.b16 %v1191, %v1187
    %v1456 = vpack.c.b16 %v1192, %v1188
    %v1457 = vpack.c.b16 %v1197, %v1193
    %v1458 = vpack.c.b16 %v1198, %v1194
    %v1459 = vpack.c.b16 %v1199, %v1195
    %v1460 = vpack.c.b16 %v1200, %v1196
    %v1461 = vpack.c.b16 %v1205, %v1201
    %v1462 = vpack.c.b16 %v1206, %v1202
    %v1463 = vpack.c.b16 %v1207, %v1203
    %v1464 = vpack.c.b16 %v1208, %v1204
    %1721 = vmatpush.bf16.msra.mxu0 %v1237
    %1722 = vmatpush.bf16.msra.mxu0 %v1233
    %1723 = vmatpush.bf16.msra.mxu0 %v1229
    %1724 = vmatpush.bf16.msra.mxu0 %v1225
    %1725 = vmatpush.bf16.msra.mxu0 %v1221
    %1726 = vmatpush.bf16.msra.mxu0 %v1217
    %1727 = vmatpush.bf16.msra.mxu0 %v1213
    %1728 = vmatpush.bf16.msra.mxu0 %v1209
    %1729 = vmatmul.bf16.gmra.mxu0 %v167
    %v1730 = vpop.f32.mrf.mxu0
    %v1731 = vadd.f32 %v433, %v1730
    %v1732 = vpop.f32.mrf.mxu0
    %1733 = vdwg.mxu0
    %1734 = vmatpush.bf16.msra.mxu0 %v1269
    %1735 = vmatpush.bf16.msra.mxu0 %v1265
    %1736 = vmatpush.bf16.msra.mxu0 %v1261
    %1737 = vmatpush.bf16.msra.mxu0 %v1257
    %1738 = vmatpush.bf16.msra.mxu0 %v1253
    %1739 = vmatpush.bf16.msra.mxu0 %v1249
    %1740 = vmatpush.bf16.msra.mxu0 %v1245
    %1741 = vmatpush.bf16.msra.mxu0 %v1241
    %1742 = vmatmul.bf16.gmra.mxu0 %v168
    %v1743 = vpop.f32.mrf.mxu0
    %v1744 = vadd.f32 %v1731, %v1743
    %v1745 = vpop.f32.mrf.mxu0
    %1746 = vdwg.mxu0
    %1747 = vmatpush.bf16.msra.mxu0 %v1301
    %1748 = vmatpush.bf16.msra.mxu0 %v1297
    %1749 = vmatpush.bf16.msra.mxu0 %v1293
    %1750 = vmatpush.bf16.msra.mxu0 %v1289
    %1751 = vmatpush.bf16.msra.mxu0 %v1285
    %1752 = vmatpush.bf16.msra.mxu0 %v1281
    %1753 = vmatpush.bf16.msra.mxu0 %v1277
    %1754 = vmatpush.bf16.msra.mxu0 %v1273
    %1755 = vmatmul.bf16.gmra.mxu0 %v169
    %v1756 = vpop.f32.mrf.mxu0
    %v1757 = vadd.f32 %v1744, %v1756
    %v1758 = vpop.f32.mrf.mxu0
    %1759 = vdwg.mxu0
    %1760 = vmatpush.bf16.msra.mxu0 %v1333
    %1761 = vmatpush.bf16.msra.mxu0 %v1329
    %1762 = vmatpush.bf16.msra.mxu0 %v1325
    %1763 = vmatpush.bf16.msra.mxu0 %v1321
    %1764 = vmatpush.bf16.msra.mxu0 %v1317
    %1765 = vmatpush.bf16.msra.mxu0 %v1313
    %1766 = vmatpush.bf16.msra.mxu0 %v1309
    %1767 = vmatpush.bf16.msra.mxu0 %v1305
    %1768 = vmatmul.bf16.gmra.mxu0 %v170
    %v1769 = vpop.f32.mrf.mxu0
    %v1770 = vadd.f32 %v1757, %v1769
    %v1771 = vpop.f32.mrf.mxu0
    %1772 = vdwg.mxu0
    %1773 = vmatpush.bf16.msra.mxu0 %v1365
    %1774 = vmatpush.bf16.msra.mxu0 %v1361
    %1775 = vmatpush.bf16.msra.mxu0 %v1357
    %1776 = vmatpush.bf16.msra.mxu0 %v1353
    %1777 = vmatpush.bf16.msra.mxu0 %v1349
    %1778 = vmatpush.bf16.msra.mxu0 %v1345
    %1779 = vmatpush.bf16.msra.mxu0 %v1341
    %1780 = vmatpush.bf16.msra.mxu0 %v1337
    %1781 = vmatmul.bf16.gmra.mxu0 %v171
    %v1782 = vpop.f32.mrf.mxu0
    %v1783 = vadd.f32 %v1770, %v1782
    %v1784 = vpop.f32.mrf.mxu0
    %1785 = vdwg.mxu0
    %1786 = vmatpush.bf16.msra.mxu0 %v1397
    %1787 = vmatpush.bf16.msra.mxu0 %v1393
    %1788 = vmatpush.bf16.msra.mxu0 %v1389
    %1789 = vmatpush.bf16.msra.mxu0 %v1385
    %1790 = vmatpush.bf16.msra.mxu0 %v1381
    %1791 = vmatpush.bf16.msra.mxu0 %v1377
    %1792 = vmatpush.bf16.msra.mxu0 %v1373
    %1793 = vmatpush.bf16.msra.mxu0 %v1369
    %1794 = vmatmul.bf16.gmra.mxu0 %v172
    %v1795 = vpop.f32.mrf.mxu0
    %v1796 = vadd.f32 %v1783, %v1795
    %v1797 = vpop.f32.mrf.mxu0
    %1798 = vdwg.mxu0
    %1799 = vmatpush.bf16.msra.mxu0 %v1429
    %1800 = vmatpush.bf16.msra.mxu0 %v1425
    %1801 = vmatpush.bf16.msra.mxu0 %v1421
    %1802 = vmatpush.bf16.msra.mxu0 %v1417
    %1803 = vmatpush.bf16.msra.mxu0 %v1413
    %1804 = vmatpush.bf16.msra.mxu0 %v1409
    %1805 = vmatpush.bf16.msra.mxu0 %v1405
    %1806 = vmatpush.bf16.msra.mxu0 %v1401
    %1807 = vmatmul.bf16.gmra.mxu0 %v173
    %v1808 = vpop.f32.mrf.mxu0
    %v1809 = vadd.f32 %v1796, %v1808
    %v1810 = vpop.f32.mrf.mxu0
    %1811 = vdwg.mxu0
    %1812 = vmatpush.bf16.msra.mxu0 %v1461
    %1813 = vmatpush.bf16.msra.mxu0 %v1457
    %1814 = vmatpush.bf16.msra.mxu0 %v1453
    %1815 = vmatpush.bf16.msra.mxu0 %v1449
    %1816 = vmatpush.bf16.msra.mxu0 %v1445
    %1817 = vmatpush.bf16.msra.mxu0 %v1441
    %1818 = vmatpush.bf16.msra.mxu0 %v1437
    %1819 = vmatpush.bf16.msra.mxu0 %v1433
    %1820 = vmatmul.bf16.gmra.mxu0 %v174
    %v1821 = vpop.f32.mrf.mxu0
    %v1822 = vadd.f32 %v1809, %v1821
    %v1823 = vpop.f32.mrf.mxu0
    %1824 = vdwg.mxu0
    %1825 = vmatpush.bf16.msra.mxu0 %v1238
    %1826 = vmatpush.bf16.msra.mxu0 %v1234
    %1827 = vmatpush.bf16.msra.mxu0 %v1230
    %1828 = vmatpush.bf16.msra.mxu0 %v1226
    %1829 = vmatpush.bf16.msra.mxu0 %v1222
    %1830 = vmatpush.bf16.msra.mxu0 %v1218
    %1831 = vmatpush.bf16.msra.mxu0 %v1214
    %1832 = vmatpush.bf16.msra.mxu0 %v1210
    %1833 = vmatmul.bf16.gmra.mxu0 %v167
    %v1834 = vpop.f32.mrf.mxu0
    %v1835 = vadd.f32 %v434, %v1834
    %v1836 = vpop.f32.mrf.mxu0
    %1837 = vdwg.mxu0
    %1838 = vmatpush.bf16.msra.mxu0 %v1270
    %1839 = vmatpush.bf16.msra.mxu0 %v1266
    %1840 = vmatpush.bf16.msra.mxu0 %v1262
    %1841 = vmatpush.bf16.msra.mxu0 %v1258
    %1842 = vmatpush.bf16.msra.mxu0 %v1254
    %1843 = vmatpush.bf16.msra.mxu0 %v1250
    %1844 = vmatpush.bf16.msra.mxu0 %v1246
    %1845 = vmatpush.bf16.msra.mxu0 %v1242
    %1846 = vmatmul.bf16.gmra.mxu0 %v168
    %v1847 = vpop.f32.mrf.mxu0
    %v1848 = vadd.f32 %v1835, %v1847
    %v1849 = vpop.f32.mrf.mxu0
    %1850 = vdwg.mxu0
    %1851 = vmatpush.bf16.msra.mxu0 %v1302
    %1852 = vmatpush.bf16.msra.mxu0 %v1298
    %1853 = vmatpush.bf16.msra.mxu0 %v1294
    %1854 = vmatpush.bf16.msra.mxu0 %v1290
    %1855 = vmatpush.bf16.msra.mxu0 %v1286
    %1856 = vmatpush.bf16.msra.mxu0 %v1282
    %1857 = vmatpush.bf16.msra.mxu0 %v1278
    %1858 = vmatpush.bf16.msra.mxu0 %v1274
    %1859 = vmatmul.bf16.gmra.mxu0 %v169
    %v1860 = vpop.f32.mrf.mxu0
    %v1861 = vadd.f32 %v1848, %v1860
    %v1862 = vpop.f32.mrf.mxu0
    %1863 = vdwg.mxu0
    %1864 = vmatpush.bf16.msra.mxu0 %v1334
    %1865 = vmatpush.bf16.msra.mxu0 %v1330
    %1866 = vmatpush.bf16.msra.mxu0 %v1326
    %1867 = vmatpush.bf16.msra.mxu0 %v1322
    %1868 = vmatpush.bf16.msra.mxu0 %v1318
    %1869 = vmatpush.bf16.msra.mxu0 %v1314
    %1870 = vmatpush.bf16.msra.mxu0 %v1310
    %1871 = vmatpush.bf16.msra.mxu0 %v1306
    %1872 = vmatmul.bf16.gmra.mxu0 %v170
    %v1873 = vpop.f32.mrf.mxu0
    %v1874 = vadd.f32 %v1861, %v1873
    %v1875 = vpop.f32.mrf.mxu0
    %1876 = vdwg.mxu0
    %1877 = vmatpush.bf16.msra.mxu0 %v1366
    %1878 = vmatpush.bf16.msra.mxu0 %v1362
    %1879 = vmatpush.bf16.msra.mxu0 %v1358
    %1880 = vmatpush.bf16.msra.mxu0 %v1354
    %1881 = vmatpush.bf16.msra.mxu0 %v1350
    %1882 = vmatpush.bf16.msra.mxu0 %v1346
    %1883 = vmatpush.bf16.msra.mxu0 %v1342
    %1884 = vmatpush.bf16.msra.mxu0 %v1338
    %1885 = vmatmul.bf16.gmra.mxu0 %v171
    %v1886 = vpop.f32.mrf.mxu0
    %v1887 = vadd.f32 %v1874, %v1886
    %v1888 = vpop.f32.mrf.mxu0
    %1889 = vdwg.mxu0
    %1890 = vmatpush.bf16.msra.mxu0 %v1398
    %1891 = vmatpush.bf16.msra.mxu0 %v1394
    %1892 = vmatpush.bf16.msra.mxu0 %v1390
    %1893 = vmatpush.bf16.msra.mxu0 %v1386
    %1894 = vmatpush.bf16.msra.mxu0 %v1382
    %1895 = vmatpush.bf16.msra.mxu0 %v1378
    %1896 = vmatpush.bf16.msra.mxu0 %v1374
    %1897 = vmatpush.bf16.msra.mxu0 %v1370
    %1898 = vmatmul.bf16.gmra.mxu0 %v172
    %v1899 = vpop.f32.mrf.mxu0
    %v1900 = vadd.f32 %v1887, %v1899
    %v1901 = vpop.f32.mrf.mxu0
    %1902 = vdwg.mxu0
    %1903 = vmatpush.bf16.msra.mxu0 %v1430
    %1904 = vmatpush.bf16.msra.mxu0 %v1426
    %1905 = vmatpush.bf16.msra.mxu0 %v1422
    %1906 = vmatpush.bf16.msra.mxu0 %v1418
    %1907 = vmatpush.bf16.msra.mxu0 %v1414
    %1908 = vmatpush.bf16.msra.mxu0 %v1410
    %1909 = vmatpush.bf16.msra.mxu0 %v1406
    %1910 = vmatpush.bf16.msra.mxu0 %v1402
    %1911 = vmatmul.bf16.gmra.mxu0 %v173
    %v1912 = vpop.f32.mrf.mxu0
    %v1913 = vadd.f32 %v1900, %v1912
    %v1914 = vpop.f32.mrf.mxu0
    %1915 = vdwg.mxu0
    %1916 = vmatpush.bf16.msra.mxu0 %v1462
    %1917 = vmatpush.bf16.msra.mxu0 %v1458
    %1918 = vmatpush.bf16.msra.mxu0 %v1454
    %1919 = vmatpush.bf16.msra.mxu0 %v1450
    %1920 = vmatpush.bf16.msra.mxu0 %v1446
    %1921 = vmatpush.bf16.msra.mxu0 %v1442
    %1922 = vmatpush.bf16.msra.mxu0 %v1438
    %1923 = vmatpush.bf16.msra.mxu0 %v1434
    %1924 = vmatmul.bf16.gmra.mxu0 %v174
    %v1925 = vpop.f32.mrf.mxu0
    %v1926 = vadd.f32 %v1913, %v1925
    %v1927 = vpop.f32.mrf.mxu0
    %1928 = vdwg.mxu0
    %1929 = vmatpush.bf16.msra.mxu0 %v1239
    %1930 = vmatpush.bf16.msra.mxu0 %v1235
    %1931 = vmatpush.bf16.msra.mxu0 %v1231
    %1932 = vmatpush.bf16.msra.mxu0 %v1227
    %1933 = vmatpush.bf16.msra.mxu0 %v1223
    %1934 = vmatpush.bf16.msra.mxu0 %v1219
    %1935 = vmatpush.bf16.msra.mxu0 %v1215
    %1936 = vmatpush.bf16.msra.mxu0 %v1211
    %1937 = vmatmul.bf16.gmra.mxu0 %v167
    %v1938 = vpop.f32.mrf.mxu0
    %v1939 = vadd.f32 %v435, %v1938
    %v1940 = vpop.f32.mrf.mxu0
    %1941 = vdwg.mxu0
    %1942 = vmatpush.bf16.msra.mxu0 %v1271
    %1943 = vmatpush.bf16.msra.mxu0 %v1267
    %1944 = vmatpush.bf16.msra.mxu0 %v1263
    %1945 = vmatpush.bf16.msra.mxu0 %v1259
    %1946 = vmatpush.bf16.msra.mxu0 %v1255
    %1947 = vmatpush.bf16.msra.mxu0 %v1251
    %1948 = vmatpush.bf16.msra.mxu0 %v1247
    %1949 = vmatpush.bf16.msra.mxu0 %v1243
    %1950 = vmatmul.bf16.gmra.mxu0 %v168
    %v1951 = vpop.f32.mrf.mxu0
    %v1952 = vadd.f32 %v1939, %v1951
    %v1953 = vpop.f32.mrf.mxu0
    %1954 = vdwg.mxu0
    %1955 = vmatpush.bf16.msra.mxu0 %v1303
    %1956 = vmatpush.bf16.msra.mxu0 %v1299
    %1957 = vmatpush.bf16.msra.mxu0 %v1295
    %1958 = vmatpush.bf16.msra.mxu0 %v1291
    %1959 = vmatpush.bf16.msra.mxu0 %v1287
    %1960 = vmatpush.bf16.msra.mxu0 %v1283
    %1961 = vmatpush.bf16.msra.mxu0 %v1279
    %1962 = vmatpush.bf16.msra.mxu0 %v1275
    %1963 = vmatmul.bf16.gmra.mxu0 %v169
    %v1964 = vpop.f32.mrf.mxu0
    %v1965 = vadd.f32 %v1952, %v1964
    %v1966 = vpop.f32.mrf.mxu0
    %1967 = vdwg.mxu0
    %1968 = vmatpush.bf16.msra.mxu0 %v1335
    %1969 = vmatpush.bf16.msra.mxu0 %v1331
    %1970 = vmatpush.bf16.msra.mxu0 %v1327
    %1971 = vmatpush.bf16.msra.mxu0 %v1323
    %1972 = vmatpush.bf16.msra.mxu0 %v1319
    %1973 = vmatpush.bf16.msra.mxu0 %v1315
    %1974 = vmatpush.bf16.msra.mxu0 %v1311
    %1975 = vmatpush.bf16.msra.mxu0 %v1307
    %1976 = vmatmul.bf16.gmra.mxu0 %v170
    %v1977 = vpop.f32.mrf.mxu0
    %v1978 = vadd.f32 %v1965, %v1977
    %v1979 = vpop.f32.mrf.mxu0
    %1980 = vdwg.mxu0
    %1981 = vmatpush.bf16.msra.mxu0 %v1367
    %1982 = vmatpush.bf16.msra.mxu0 %v1363
    %1983 = vmatpush.bf16.msra.mxu0 %v1359
    %1984 = vmatpush.bf16.msra.mxu0 %v1355
    %1985 = vmatpush.bf16.msra.mxu0 %v1351
    %1986 = vmatpush.bf16.msra.mxu0 %v1347
    %1987 = vmatpush.bf16.msra.mxu0 %v1343
    %1988 = vmatpush.bf16.msra.mxu0 %v1339
    %1989 = vmatmul.bf16.gmra.mxu0 %v171
    %v1990 = vpop.f32.mrf.mxu0
    %v1991 = vadd.f32 %v1978, %v1990
    %v1992 = vpop.f32.mrf.mxu0
    %1993 = vdwg.mxu0
    %1994 = vmatpush.bf16.msra.mxu0 %v1399
    %1995 = vmatpush.bf16.msra.mxu0 %v1395
    %1996 = vmatpush.bf16.msra.mxu0 %v1391
    %1997 = vmatpush.bf16.msra.mxu0 %v1387
    %1998 = vmatpush.bf16.msra.mxu0 %v1383
    %1999 = vmatpush.bf16.msra.mxu0 %v1379
    %2000 = vmatpush.bf16.msra.mxu0 %v1375
    %2001 = vmatpush.bf16.msra.mxu0 %v1371
    %2002 = vmatmul.bf16.gmra.mxu0 %v172
    %v2003 = vpop.f32.mrf.mxu0
    %v2004 = vadd.f32 %v1991, %v2003
    %v2005 = vpop.f32.mrf.mxu0
    %2006 = vdwg.mxu0
    %2007 = vmatpush.bf16.msra.mxu0 %v1431
    %2008 = vmatpush.bf16.msra.mxu0 %v1427
    %2009 = vmatpush.bf16.msra.mxu0 %v1423
    %2010 = vmatpush.bf16.msra.mxu0 %v1419
    %2011 = vmatpush.bf16.msra.mxu0 %v1415
    %2012 = vmatpush.bf16.msra.mxu0 %v1411
    %2013 = vmatpush.bf16.msra.mxu0 %v1407
    %2014 = vmatpush.bf16.msra.mxu0 %v1403
    %2015 = vmatmul.bf16.gmra.mxu0 %v173
    %v2016 = vpop.f32.mrf.mxu0
    %v2017 = vadd.f32 %v2004, %v2016
    %v2018 = vpop.f32.mrf.mxu0
    %2019 = vdwg.mxu0
    %2020 = vmatpush.bf16.msra.mxu0 %v1463
    %2021 = vmatpush.bf16.msra.mxu0 %v1459
    %2022 = vmatpush.bf16.msra.mxu0 %v1455
    %2023 = vmatpush.bf16.msra.mxu0 %v1451
    %2024 = vmatpush.bf16.msra.mxu0 %v1447
    %2025 = vmatpush.bf16.msra.mxu0 %v1443
    %2026 = vmatpush.bf16.msra.mxu0 %v1439
    %2027 = vmatpush.bf16.msra.mxu0 %v1435
    %2028 = vmatmul.bf16.gmra.mxu0 %v174
    %v2029 = vpop.f32.mrf.mxu0
    %v2030 = vadd.f32 %v2017, %v2029
    %v2031 = vpop.f32.mrf.mxu0
    %2032 = vdwg.mxu0
    %2033 = vmatpush.bf16.msra.mxu0 %v1240
    %2034 = vmatpush.bf16.msra.mxu0 %v1236
    %2035 = vmatpush.bf16.msra.mxu0 %v1232
    %2036 = vmatpush.bf16.msra.mxu0 %v1228
    %2037 = vmatpush.bf16.msra.mxu0 %v1224
    %2038 = vmatpush.bf16.msra.mxu0 %v1220
    %2039 = vmatpush.bf16.msra.mxu0 %v1216
    %2040 = vmatpush.bf16.msra.mxu0 %v1212
    %2041 = vmatmul.bf16.gmra.mxu0 %v167
    %v2042 = vpop.f32.mrf.mxu0
    %v2043 = vadd.f32 %v436, %v2042
    %v2044 = vpop.f32.mrf.mxu0
    %2045 = vdwg.mxu0
    %2046 = vmatpush.bf16.msra.mxu0 %v1272
    %2047 = vmatpush.bf16.msra.mxu0 %v1268
    %2048 = vmatpush.bf16.msra.mxu0 %v1264
    %2049 = vmatpush.bf16.msra.mxu0 %v1260
    %2050 = vmatpush.bf16.msra.mxu0 %v1256
    %2051 = vmatpush.bf16.msra.mxu0 %v1252
    %2052 = vmatpush.bf16.msra.mxu0 %v1248
    %2053 = vmatpush.bf16.msra.mxu0 %v1244
    %2054 = vmatmul.bf16.gmra.mxu0 %v168
    %v2055 = vpop.f32.mrf.mxu0
    %v2056 = vadd.f32 %v2043, %v2055
    %v2057 = vpop.f32.mrf.mxu0
    %2058 = vdwg.mxu0
    %2059 = vmatpush.bf16.msra.mxu0 %v1304
    %2060 = vmatpush.bf16.msra.mxu0 %v1300
    %2061 = vmatpush.bf16.msra.mxu0 %v1296
    %2062 = vmatpush.bf16.msra.mxu0 %v1292
    %2063 = vmatpush.bf16.msra.mxu0 %v1288
    %2064 = vmatpush.bf16.msra.mxu0 %v1284
    %2065 = vmatpush.bf16.msra.mxu0 %v1280
    %2066 = vmatpush.bf16.msra.mxu0 %v1276
    %2067 = vmatmul.bf16.gmra.mxu0 %v169
    %v2068 = vpop.f32.mrf.mxu0
    %v2069 = vadd.f32 %v2056, %v2068
    %v2070 = vpop.f32.mrf.mxu0
    %2071 = vdwg.mxu0
    %2072 = vmatpush.bf16.msra.mxu0 %v1336
    %2073 = vmatpush.bf16.msra.mxu0 %v1332
    %2074 = vmatpush.bf16.msra.mxu0 %v1328
    %2075 = vmatpush.bf16.msra.mxu0 %v1324
    %2076 = vmatpush.bf16.msra.mxu0 %v1320
    %2077 = vmatpush.bf16.msra.mxu0 %v1316
    %2078 = vmatpush.bf16.msra.mxu0 %v1312
    %2079 = vmatpush.bf16.msra.mxu0 %v1308
    %2080 = vmatmul.bf16.gmra.mxu0 %v170
    %v2081 = vpop.f32.mrf.mxu0
    %v2082 = vadd.f32 %v2069, %v2081
    %v2083 = vpop.f32.mrf.mxu0
    %2084 = vdwg.mxu0
    %2085 = vmatpush.bf16.msra.mxu0 %v1368
    %2086 = vmatpush.bf16.msra.mxu0 %v1364
    %2087 = vmatpush.bf16.msra.mxu0 %v1360
    %2088 = vmatpush.bf16.msra.mxu0 %v1356
    %2089 = vmatpush.bf16.msra.mxu0 %v1352
    %2090 = vmatpush.bf16.msra.mxu0 %v1348
    %2091 = vmatpush.bf16.msra.mxu0 %v1344
    %2092 = vmatpush.bf16.msra.mxu0 %v1340
    %2093 = vmatmul.bf16.gmra.mxu0 %v171
    %v2094 = vpop.f32.mrf.mxu0
    %v2095 = vadd.f32 %v2082, %v2094
    %v2096 = vpop.f32.mrf.mxu0
    %2097 = vdwg.mxu0
    %2098 = vmatpush.bf16.msra.mxu0 %v1400
    %2099 = vmatpush.bf16.msra.mxu0 %v1396
    %2100 = vmatpush.bf16.msra.mxu0 %v1392
    %2101 = vmatpush.bf16.msra.mxu0 %v1388
    %2102 = vmatpush.bf16.msra.mxu0 %v1384
    %2103 = vmatpush.bf16.msra.mxu0 %v1380
    %2104 = vmatpush.bf16.msra.mxu0 %v1376
    %2105 = vmatpush.bf16.msra.mxu0 %v1372
    %2106 = vmatmul.bf16.gmra.mxu0 %v172
    %v2107 = vpop.f32.mrf.mxu0
    %v2108 = vadd.f32 %v2095, %v2107
    %v2109 = vpop.f32.mrf.mxu0
    %2110 = vdwg.mxu0
    %2111 = vmatpush.bf16.msra.mxu0 %v1432
    %2112 = vmatpush.bf16.msra.mxu0 %v1428
    %2113 = vmatpush.bf16.msra.mxu0 %v1424
    %2114 = vmatpush.bf16.msra.mxu0 %v1420
    %2115 = vmatpush.bf16.msra.mxu0 %v1416
    %2116 = vmatpush.bf16.msra.mxu0 %v1412
    %2117 = vmatpush.bf16.msra.mxu0 %v1408
    %2118 = vmatpush.bf16.msra.mxu0 %v1404
    %2119 = vmatmul.bf16.gmra.mxu0 %v173
    %v2120 = vpop.f32.mrf.mxu0
    %v2121 = vadd.f32 %v2108, %v2120
    %v2122 = vpop.f32.mrf.mxu0
    %2123 = vdwg.mxu0
    %2124 = vmatpush.bf16.msra.mxu0 %v1464
    %2125 = vmatpush.bf16.msra.mxu0 %v1460
    %2126 = vmatpush.bf16.msra.mxu0 %v1456
    %2127 = vmatpush.bf16.msra.mxu0 %v1452
    %2128 = vmatpush.bf16.msra.mxu0 %v1448
    %2129 = vmatpush.bf16.msra.mxu0 %v1444
    %2130 = vmatpush.bf16.msra.mxu0 %v1440
    %2131 = vmatpush.bf16.msra.mxu0 %v1436
    %2132 = vmatmul.bf16.gmra.mxu0 %v174
    %v2133 = vpop.f32.mrf.mxu0
    %v2134 = vadd.f32 %v2121, %v2133
    %v2135 = vpop.f32.mrf.mxu0
    %2136 = vdwg.mxu0
    %v2137 = vmax.f32 %v1822, 0.0
    %v2138 = vmax.f32 %v1926, 0.0
    %v2139 = vmax.f32 %v2030, 0.0
    %v2140 = vmax.f32 %v2134, 0.0
    %v2141 = vmin.f32 %v2137, 1.0
    %v2142 = vmin.f32 %v2138, 1.0
    %v2143 = vmin.f32 %v2139, 1.0
    %v2144 = vmin.f32 %v2140, 1.0
    %v2145 = vpack.c.bf16 %v2141, %v2141
    %v2146 = vpack.c.bf16 %v2142, %v2142
    %v2147 = vpack.c.bf16 %v2143, %v2143
    %v2148 = vpack.c.bf16 %v2144, %v2144
    %v2149 = vld [vmem:[#allocation8] sm:$0xff]
    %v2150 = vld [vmem:[#allocation8 + $0x8] sm:$0xff]
    %v2151 = vld [vmem:[#allocation8 + $0x10] sm:$0xff]
    %v2152 = vld [vmem:[#allocation8 + $0x18] sm:$0xff]
    %v2153 = vld [vmem:[#allocation8 + $0x20] sm:$0xff]
    %v2154 = vld [vmem:[#allocation8 + $0x28] sm:$0xff]
    %v2155 = vld [vmem:[#allocation8 + $0x30] sm:$0xff]
    %v2156 = vld [vmem:[#allocation8 + $0x38] sm:$0xff]
    %v2157 = vld [vmem:[#allocation8 + $0x40] sm:$0xff]
    %v2158 = vld [vmem:[#allocation8 + $0x48] sm:$0xff]
    %v2159 = vld [vmem:[#allocation8 + $0x50] sm:$0xff]
    %v2160 = vld [vmem:[#allocation8 + $0x58] sm:$0xff]
    %v2161 = vld [vmem:[#allocation8 + $0x60] sm:$0xff]
    %v2162 = vld [vmem:[#allocation8 + $0x68] sm:$0xff]
    %v2163 = vld [vmem:[#allocation8 + $0x70] sm:$0xff]
    %v2164 = vld [vmem:[#allocation8 + $0x78] sm:$0xff]
    %v2165 = vld [vmem:[#allocation8 + $0x80] sm:$0xff]
    %v2166 = vld [vmem:[#allocation8 + $0x88] sm:$0xff]
    %v2167 = vld [vmem:[#allocation8 + $0x90] sm:$0xff]
    %v2168 = vld [vmem:[#allocation8 + $0x98] sm:$0xff]
    %v2169 = vld [vmem:[#allocation8 + $0xa0] sm:$0xff]
    %v2170 = vld [vmem:[#allocation8 + $0xa8] sm:$0xff]
    %v2171 = vld [vmem:[#allocation8 + $0xb0] sm:$0xff]
    %v2172 = vld [vmem:[#allocation8 + $0xb8] sm:$0xff]
    %v2173 = vld [vmem:[#allocation8 + $0xc0] sm:$0xff]
    %v2174 = vld [vmem:[#allocation8 + $0xc8] sm:$0xff]
    %v2175 = vld [vmem:[#allocation8 + $0xd0] sm:$0xff]
    %v2176 = vld [vmem:[#allocation8 + $0xd8] sm:$0xff]
    %v2177 = vld [vmem:[#allocation8 + $0xe0] sm:$0xff]
    %v2178 = vld [vmem:[#allocation8 + $0xe8] sm:$0xff]
    %v2179 = vld [vmem:[#allocation8 + $0xf0] sm:$0xff]
    %v2180 = vld [vmem:[#allocation8 + $0xf8] sm:$0xff]
    %v2181 = vld [vmem:[#allocation8 + $0x100] sm:$0xff]
    %v2182 = vld [vmem:[#allocation8 + $0x108] sm:$0xff]
    %v2183 = vld [vmem:[#allocation8 + $0x110] sm:$0xff]
    %v2184 = vld [vmem:[#allocation8 + $0x118] sm:$0xff]
    %v2185 = vld [vmem:[#allocation8 + $0x120] sm:$0xff]
    %v2186 = vld [vmem:[#allocation8 + $0x128] sm:$0xff]
    %v2187 = vld [vmem:[#allocation8 + $0x130] sm:$0xff]
    %v2188 = vld [vmem:[#allocation8 + $0x138] sm:$0xff]
    %v2189 = vld [vmem:[#allocation8 + $0x140] sm:$0xff]
    %v2190 = vld [vmem:[#allocation8 + $0x148] sm:$0xff]
    %v2191 = vld [vmem:[#allocation8 + $0x150] sm:$0xff]
    %v2192 = vld [vmem:[#allocation8 + $0x158] sm:$0xff]
    %v2193 = vld [vmem:[#allocation8 + $0x160] sm:$0xff]
    %v2194 = vld [vmem:[#allocation8 + $0x168] sm:$0xff]
    %v2195 = vld [vmem:[#allocation8 + $0x170] sm:$0xff]
    %v2196 = vld [vmem:[#allocation8 + $0x178] sm:$0xff]
    %v2197 = vld [vmem:[#allocation8 + $0x180] sm:$0xff]
    %v2198 = vld [vmem:[#allocation8 + $0x188] sm:$0xff]
    %v2199 = vld [vmem:[#allocation8 + $0x190] sm:$0xff]
    %v2200 = vld [vmem:[#allocation8 + $0x198] sm:$0xff]
    %v2201 = vld [vmem:[#allocation8 + $0x1a0] sm:$0xff]
    %v2202 = vld [vmem:[#allocation8 + $0x1a8] sm:$0xff]
    %v2203 = vld [vmem:[#allocation8 + $0x1b0] sm:$0xff]
    %v2204 = vld [vmem:[#allocation8 + $0x1b8] sm:$0xff]
    %v2205 = vld [vmem:[#allocation8 + $0x1c0] sm:$0xff]
    %v2206 = vld [vmem:[#allocation8 + $0x1c8] sm:$0xff]
    %v2207 = vld [vmem:[#allocation8 + $0x1d0] sm:$0xff]
    %v2208 = vld [vmem:[#allocation8 + $0x1d8] sm:$0xff]
    %v2209 = vld [vmem:[#allocation8 + $0x1e0] sm:$0xff]
    %v2210 = vld [vmem:[#allocation8 + $0x1e8] sm:$0xff]
    %v2211 = vld [vmem:[#allocation8 + $0x1f0] sm:$0xff]
    %v2212 = vld [vmem:[#allocation8 + $0x1f8] sm:$0xff]
    %v2213 = vld [vmem:[#allocation8 + $0x200] sm:$0xff]
    %v2214 = vld [vmem:[#allocation8 + $0x208] sm:$0xff]
    %v2215 = vld [vmem:[#allocation8 + $0x210] sm:$0xff]
    %v2216 = vld [vmem:[#allocation8 + $0x218] sm:$0xff]
    %v2217 = vld [vmem:[#allocation8 + $0x220] sm:$0xff]
    %v2218 = vld [vmem:[#allocation8 + $0x228] sm:$0xff]
    %v2219 = vld [vmem:[#allocation8 + $0x230] sm:$0xff]
    %v2220 = vld [vmem:[#allocation8 + $0x238] sm:$0xff]
    %v2221 = vld [vmem:[#allocation8 + $0x240] sm:$0xff]
    %v2222 = vld [vmem:[#allocation8 + $0x248] sm:$0xff]
    %v2223 = vld [vmem:[#allocation8 + $0x250] sm:$0xff]
    %v2224 = vld [vmem:[#allocation8 + $0x258] sm:$0xff]
    %v2225 = vld [vmem:[#allocation8 + $0x260] sm:$0xff]
    %v2226 = vld [vmem:[#allocation8 + $0x268] sm:$0xff]
    %v2227 = vld [vmem:[#allocation8 + $0x270] sm:$0xff]
    %v2228 = vld [vmem:[#allocation8 + $0x278] sm:$0xff]
    %v2229 = vld [vmem:[#allocation8 + $0x280] sm:$0xff]
    %v2230 = vld [vmem:[#allocation8 + $0x288] sm:$0xff]
    %v2231 = vld [vmem:[#allocation8 + $0x290] sm:$0xff]
    %v2232 = vld [vmem:[#allocation8 + $0x298] sm:$0xff]
    %v2233 = vld [vmem:[#allocation8 + $0x2a0] sm:$0xff]
    %v2234 = vld [vmem:[#allocation8 + $0x2a8] sm:$0xff]
    %v2235 = vld [vmem:[#allocation8 + $0x2b0] sm:$0xff]
    %v2236 = vld [vmem:[#allocation8 + $0x2b8] sm:$0xff]
    %v2237 = vld [vmem:[#allocation8 + $0x2c0] sm:$0xff]
    %v2238 = vld [vmem:[#allocation8 + $0x2c8] sm:$0xff]
    %v2239 = vld [vmem:[#allocation8 + $0x2d0] sm:$0xff]
    %v2240 = vld [vmem:[#allocation8 + $0x2d8] sm:$0xff]
    %v2241 = vld [vmem:[#allocation8 + $0x2e0] sm:$0xff]
    %v2242 = vld [vmem:[#allocation8 + $0x2e8] sm:$0xff]
    %v2243 = vld [vmem:[#allocation8 + $0x2f0] sm:$0xff]
    %v2244 = vld [vmem:[#allocation8 + $0x2f8] sm:$0xff]
    %v2245 = vld [vmem:[#allocation8 + $0x300] sm:$0xff]
    %v2246 = vld [vmem:[#allocation8 + $0x308] sm:$0xff]
    %v2247 = vld [vmem:[#allocation8 + $0x310] sm:$0xff]
    %v2248 = vld [vmem:[#allocation8 + $0x318] sm:$0xff]
    %v2249 = vld [vmem:[#allocation8 + $0x320] sm:$0xff]
    %v2250 = vld [vmem:[#allocation8 + $0x328] sm:$0xff]
    %v2251 = vld [vmem:[#allocation8 + $0x330] sm:$0xff]
    %v2252 = vld [vmem:[#allocation8 + $0x338] sm:$0xff]
    %v2253 = vld [vmem:[#allocation8 + $0x340] sm:$0xff]
    %v2254 = vld [vmem:[#allocation8 + $0x348] sm:$0xff]
    %v2255 = vld [vmem:[#allocation8 + $0x350] sm:$0xff]
    %v2256 = vld [vmem:[#allocation8 + $0x358] sm:$0xff]
    %v2257 = vld [vmem:[#allocation8 + $0x360] sm:$0xff]
    %v2258 = vld [vmem:[#allocation8 + $0x368] sm:$0xff]
    %v2259 = vld [vmem:[#allocation8 + $0x370] sm:$0xff]
    %v2260 = vld [vmem:[#allocation8 + $0x378] sm:$0xff]
    %v2261 = vld [vmem:[#allocation8 + $0x380] sm:$0xff]
    %v2262 = vld [vmem:[#allocation8 + $0x388] sm:$0xff]
    %v2263 = vld [vmem:[#allocation8 + $0x390] sm:$0xff]
    %v2264 = vld [vmem:[#allocation8 + $0x398] sm:$0xff]
    %v2265 = vld [vmem:[#allocation8 + $0x3a0] sm:$0xff]
    %v2266 = vld [vmem:[#allocation8 + $0x3a8] sm:$0xff]
    %v2267 = vld [vmem:[#allocation8 + $0x3b0] sm:$0xff]
    %v2268 = vld [vmem:[#allocation8 + $0x3b8] sm:$0xff]
    %v2269 = vld [vmem:[#allocation8 + $0x3c0] sm:$0xff]
    %v2270 = vld [vmem:[#allocation8 + $0x3c8] sm:$0xff]
    %v2271 = vld [vmem:[#allocation8 + $0x3d0] sm:$0xff]
    %v2272 = vld [vmem:[#allocation8 + $0x3d8] sm:$0xff]
    %v2273 = vld [vmem:[#allocation8 + $0x3e0] sm:$0xff]
    %v2274 = vld [vmem:[#allocation8 + $0x3e8] sm:$0xff]
    %v2275 = vld [vmem:[#allocation8 + $0x3f0] sm:$0xff]
    %v2276 = vld [vmem:[#allocation8 + $0x3f8] sm:$0xff]
    %v2277 = vld [vmem:[#allocation10] sm:$0xf]
    %v2279 = vperm.slane %v2277, 0
    %v2280 = vperm.slane %v2277, 1
    %v2281 = vperm.slane %v2277, 2
    %v2282 = vperm.slane %v2277, 3
    %v2415 = vunpack.c.l.b16 %v2149
    %v2416 = vunpack.c.h.b16 %v2149
    %v2417 = vunpack.c.l.b16 %v2150
    %v2418 = vunpack.c.h.b16 %v2150
    %v2419 = vunpack.c.l.b16 %v2151
    %v2420 = vunpack.c.h.b16 %v2151
    %v2421 = vunpack.c.l.b16 %v2152
    %v2422 = vunpack.c.h.b16 %v2152
    %v2423 = vunpack.c.l.b16 %v2153
    %v2424 = vunpack.c.h.b16 %v2153
    %v2425 = vunpack.c.l.b16 %v2154
    %v2426 = vunpack.c.h.b16 %v2154
    %v2427 = vunpack.c.l.b16 %v2155
    %v2428 = vunpack.c.h.b16 %v2155
    %v2429 = vunpack.c.l.b16 %v2156
    %v2430 = vunpack.c.h.b16 %v2156
    %v2431 = vunpack.c.l.b16 %v2157
    %v2432 = vunpack.c.h.b16 %v2157
    %v2433 = vunpack.c.l.b16 %v2158
    %v2434 = vunpack.c.h.b16 %v2158
    %v2435 = vunpack.c.l.b16 %v2159
    %v2436 = vunpack.c.h.b16 %v2159
    %v2437 = vunpack.c.l.b16 %v2160
    %v2438 = vunpack.c.h.b16 %v2160
    %v2439 = vunpack.c.l.b16 %v2161
    %v2440 = vunpack.c.h.b16 %v2161
    %v2441 = vunpack.c.l.b16 %v2162
    %v2442 = vunpack.c.h.b16 %v2162
    %v2443 = vunpack.c.l.b16 %v2163
    %v2444 = vunpack.c.h.b16 %v2163
    %v2445 = vunpack.c.l.b16 %v2164
    %v2446 = vunpack.c.h.b16 %v2164
    %v2447 = vunpack.c.l.b16 %v2165
    %v2448 = vunpack.c.h.b16 %v2165
    %v2449 = vunpack.c.l.b16 %v2166
    %v2450 = vunpack.c.h.b16 %v2166
    %v2451 = vunpack.c.l.b16 %v2167
    %v2452 = vunpack.c.h.b16 %v2167
    %v2453 = vunpack.c.l.b16 %v2168
    %v2454 = vunpack.c.h.b16 %v2168
    %v2455 = vunpack.c.l.b16 %v2169
    %v2456 = vunpack.c.h.b16 %v2169
    %v2457 = vunpack.c.l.b16 %v2170
    %v2458 = vunpack.c.h.b16 %v2170
    %v2459 = vunpack.c.l.b16 %v2171
    %v2460 = vunpack.c.h.b16 %v2171
    %v2461 = vunpack.c.l.b16 %v2172
    %v2462 = vunpack.c.h.b16 %v2172
    %v2463 = vunpack.c.l.b16 %v2173
    %v2464 = vunpack.c.h.b16 %v2173
    %v2465 = vunpack.c.l.b16 %v2174
    %v2466 = vunpack.c.h.b16 %v2174
    %v2467 = vunpack.c.l.b16 %v2175
    %v2468 = vunpack.c.h.b16 %v2175
    %v2469 = vunpack.c.l.b16 %v2176
    %v2470 = vunpack.c.h.b16 %v2176
    %v2471 = vunpack.c.l.b16 %v2177
    %v2472 = vunpack.c.h.b16 %v2177
    %v2473 = vunpack.c.l.b16 %v2178
    %v2474 = vunpack.c.h.b16 %v2178
    %v2475 = vunpack.c.l.b16 %v2179
    %v2476 = vunpack.c.h.b16 %v2179
    %v2477 = vunpack.c.l.b16 %v2180
    %v2478 = vunpack.c.h.b16 %v2180
    %v2479 = vunpack.c.l.b16 %v2181
    %v2480 = vunpack.c.h.b16 %v2181
    %v2481 = vunpack.c.l.b16 %v2182
    %v2482 = vunpack.c.h.b16 %v2182
    %v2483 = vunpack.c.l.b16 %v2183
    %v2484 = vunpack.c.h.b16 %v2183
    %v2485 = vunpack.c.l.b16 %v2184
    %v2486 = vunpack.c.h.b16 %v2184
    %v2487 = vunpack.c.l.b16 %v2185
    %v2488 = vunpack.c.h.b16 %v2185
    %v2489 = vunpack.c.l.b16 %v2186
    %v2490 = vunpack.c.h.b16 %v2186
    %v2491 = vunpack.c.l.b16 %v2187
    %v2492 = vunpack.c.h.b16 %v2187
    %v2493 = vunpack.c.l.b16 %v2188
    %v2494 = vunpack.c.h.b16 %v2188
    %v2495 = vunpack.c.l.b16 %v2189
    %v2496 = vunpack.c.h.b16 %v2189
    %v2497 = vunpack.c.l.b16 %v2190
    %v2498 = vunpack.c.h.b16 %v2190
    %v2499 = vunpack.c.l.b16 %v2191
    %v2500 = vunpack.c.h.b16 %v2191
    %v2501 = vunpack.c.l.b16 %v2192
    %v2502 = vunpack.c.h.b16 %v2192
    %v2503 = vunpack.c.l.b16 %v2193
    %v2504 = vunpack.c.h.b16 %v2193
    %v2505 = vunpack.c.l.b16 %v2194
    %v2506 = vunpack.c.h.b16 %v2194
    %v2507 = vunpack.c.l.b16 %v2195
    %v2508 = vunpack.c.h.b16 %v2195
    %v2509 = vunpack.c.l.b16 %v2196
    %v2510 = vunpack.c.h.b16 %v2196
    %v2511 = vunpack.c.l.b16 %v2197
    %v2512 = vunpack.c.h.b16 %v2197
    %v2513 = vunpack.c.l.b16 %v2198
    %v2514 = vunpack.c.h.b16 %v2198
    %v2515 = vunpack.c.l.b16 %v2199
    %v2516 = vunpack.c.h.b16 %v2199
    %v2517 = vunpack.c.l.b16 %v2200
    %v2518 = vunpack.c.h.b16 %v2200
    %v2519 = vunpack.c.l.b16 %v2201
    %v2520 = vunpack.c.h.b16 %v2201
    %v2521 = vunpack.c.l.b16 %v2202
    %v2522 = vunpack.c.h.b16 %v2202
    %v2523 = vunpack.c.l.b16 %v2203
    %v2524 = vunpack.c.h.b16 %v2203
    %v2525 = vunpack.c.l.b16 %v2204
    %v2526 = vunpack.c.h.b16 %v2204
    %v2527 = vunpack.c.l.b16 %v2205
    %v2528 = vunpack.c.h.b16 %v2205
    %v2529 = vunpack.c.l.b16 %v2206
    %v2530 = vunpack.c.h.b16 %v2206
    %v2531 = vunpack.c.l.b16 %v2207
    %v2532 = vunpack.c.h.b16 %v2207
    %v2533 = vunpack.c.l.b16 %v2208
    %v2534 = vunpack.c.h.b16 %v2208
    %v2535 = vunpack.c.l.b16 %v2209
    %v2536 = vunpack.c.h.b16 %v2209
    %v2537 = vunpack.c.l.b16 %v2210
    %v2538 = vunpack.c.h.b16 %v2210
    %v2539 = vunpack.c.l.b16 %v2211
    %v2540 = vunpack.c.h.b16 %v2211
    %v2541 = vunpack.c.l.b16 %v2212
    %v2542 = vunpack.c.h.b16 %v2212
    %v2543 = vunpack.c.l.b16 %v2213
    %v2544 = vunpack.c.h.b16 %v2213
    %v2545 = vunpack.c.l.b16 %v2214
    %v2546 = vunpack.c.h.b16 %v2214
    %v2547 = vunpack.c.l.b16 %v2215
    %v2548 = vunpack.c.h.b16 %v2215
    %v2549 = vunpack.c.l.b16 %v2216
    %v2550 = vunpack.c.h.b16 %v2216
    %v2551 = vunpack.c.l.b16 %v2217
    %v2552 = vunpack.c.h.b16 %v2217
    %v2553 = vunpack.c.l.b16 %v2218
    %v2554 = vunpack.c.h.b16 %v2218
    %v2555 = vunpack.c.l.b16 %v2219
    %v2556 = vunpack.c.h.b16 %v2219
    %v2557 = vunpack.c.l.b16 %v2220
    %v2558 = vunpack.c.h.b16 %v2220
    %v2559 = vunpack.c.l.b16 %v2221
    %v2560 = vunpack.c.h.b16 %v2221
    %v2561 = vunpack.c.l.b16 %v2222
    %v2562 = vunpack.c.h.b16 %v2222
    %v2563 = vunpack.c.l.b16 %v2223
    %v2564 = vunpack.c.h.b16 %v2223
    %v2565 = vunpack.c.l.b16 %v2224
    %v2566 = vunpack.c.h.b16 %v2224
    %v2567 = vunpack.c.l.b16 %v2225
    %v2568 = vunpack.c.h.b16 %v2225
    %v2569 = vunpack.c.l.b16 %v2226
    %v2570 = vunpack.c.h.b16 %v2226
    %v2571 = vunpack.c.l.b16 %v2227
    %v2572 = vunpack.c.h.b16 %v2227
    %v2573 = vunpack.c.l.b16 %v2228
    %v2574 = vunpack.c.h.b16 %v2228
    %v2575 = vunpack.c.l.b16 %v2229
    %v2576 = vunpack.c.h.b16 %v2229
    %v2577 = vunpack.c.l.b16 %v2230
    %v2578 = vunpack.c.h.b16 %v2230
    %v2579 = vunpack.c.l.b16 %v2231
    %v2580 = vunpack.c.h.b16 %v2231
    %v2581 = vunpack.c.l.b16 %v2232
    %v2582 = vunpack.c.h.b16 %v2232
    %v2583 = vunpack.c.l.b16 %v2233
    %v2584 = vunpack.c.h.b16 %v2233
    %v2585 = vunpack.c.l.b16 %v2234
    %v2586 = vunpack.c.h.b16 %v2234
    %v2587 = vunpack.c.l.b16 %v2235
    %v2588 = vunpack.c.h.b16 %v2235
    %v2589 = vunpack.c.l.b16 %v2236
    %v2590 = vunpack.c.h.b16 %v2236
    %v2591 = vunpack.c.l.b16 %v2237
    %v2592 = vunpack.c.h.b16 %v2237
    %v2593 = vunpack.c.l.b16 %v2238
    %v2594 = vunpack.c.h.b16 %v2238
    %v2595 = vunpack.c.l.b16 %v2239
    %v2596 = vunpack.c.h.b16 %v2239
    %v2597 = vunpack.c.l.b16 %v2240
    %v2598 = vunpack.c.h.b16 %v2240
    %v2599 = vunpack.c.l.b16 %v2241
    %v2600 = vunpack.c.h.b16 %v2241
    %v2601 = vunpack.c.l.b16 %v2242
    %v2602 = vunpack.c.h.b16 %v2242
    %v2603 = vunpack.c.l.b16 %v2243
    %v2604 = vunpack.c.h.b16 %v2243
    %v2605 = vunpack.c.l.b16 %v2244
    %v2606 = vunpack.c.h.b16 %v2244
    %v2607 = vunpack.c.l.b16 %v2245
    %v2608 = vunpack.c.h.b16 %v2245
    %v2609 = vunpack.c.l.b16 %v2246
    %v2610 = vunpack.c.h.b16 %v2246
    %v2611 = vunpack.c.l.b16 %v2247
    %v2612 = vunpack.c.h.b16 %v2247
    %v2613 = vunpack.c.l.b16 %v2248
    %v2614 = vunpack.c.h.b16 %v2248
    %v2615 = vunpack.c.l.b16 %v2249
    %v2616 = vunpack.c.h.b16 %v2249
    %v2617 = vunpack.c.l.b16 %v2250
    %v2618 = vunpack.c.h.b16 %v2250
    %v2619 = vunpack.c.l.b16 %v2251
    %v2620 = vunpack.c.h.b16 %v2251
    %v2621 = vunpack.c.l.b16 %v2252
    %v2622 = vunpack.c.h.b16 %v2252
    %v2623 = vunpack.c.l.b16 %v2253
    %v2624 = vunpack.c.h.b16 %v2253
    %v2625 = vunpack.c.l.b16 %v2254
    %v2626 = vunpack.c.h.b16 %v2254
    %v2627 = vunpack.c.l.b16 %v2255
    %v2628 = vunpack.c.h.b16 %v2255
    %v2629 = vunpack.c.l.b16 %v2256
    %v2630 = vunpack.c.h.b16 %v2256
    %v2631 = vunpack.c.l.b16 %v2257
    %v2632 = vunpack.c.h.b16 %v2257
    %v2633 = vunpack.c.l.b16 %v2258
    %v2634 = vunpack.c.h.b16 %v2258
    %v2635 = vunpack.c.l.b16 %v2259
    %v2636 = vunpack.c.h.b16 %v2259
    %v2637 = vunpack.c.l.b16 %v2260
    %v2638 = vunpack.c.h.b16 %v2260
    %v2639 = vunpack.c.l.b16 %v2261
    %v2640 = vunpack.c.h.b16 %v2261
    %v2641 = vunpack.c.l.b16 %v2262
    %v2642 = vunpack.c.h.b16 %v2262
    %v2643 = vunpack.c.l.b16 %v2263
    %v2644 = vunpack.c.h.b16 %v2263
    %v2645 = vunpack.c.l.b16 %v2264
    %v2646 = vunpack.c.h.b16 %v2264
    %v2647 = vunpack.c.l.b16 %v2265
    %v2648 = vunpack.c.h.b16 %v2265
    %v2649 = vunpack.c.l.b16 %v2266
    %v2650 = vunpack.c.h.b16 %v2266
    %v2651 = vunpack.c.l.b16 %v2267
    %v2652 = vunpack.c.h.b16 %v2267
    %v2653 = vunpack.c.l.b16 %v2268
    %v2654 = vunpack.c.h.b16 %v2268
    %v2655 = vunpack.c.l.b16 %v2269
    %v2656 = vunpack.c.h.b16 %v2269
    %v2657 = vunpack.c.l.b16 %v2270
    %v2658 = vunpack.c.h.b16 %v2270
    %v2659 = vunpack.c.l.b16 %v2271
    %v2660 = vunpack.c.h.b16 %v2271
    %v2661 = vunpack.c.l.b16 %v2272
    %v2662 = vunpack.c.h.b16 %v2272
    %v2663 = vunpack.c.l.b16 %v2273
    %v2664 = vunpack.c.h.b16 %v2273
    %v2665 = vunpack.c.l.b16 %v2274
    %v2666 = vunpack.c.h.b16 %v2274
    %v2667 = vunpack.c.l.b16 %v2275
    %v2668 = vunpack.c.h.b16 %v2275
    %v2669 = vunpack.c.l.b16 %v2276
    %v2670 = vunpack.c.h.b16 %v2276
    %v2671 = vpack.c.b16 %v2419, %v2415
    %v2672 = vpack.c.b16 %v2420, %v2416
    %v2673 = vpack.c.b16 %v2421, %v2417
    %v2674 = vpack.c.b16 %v2422, %v2418
    %v2675 = vpack.c.b16 %v2427, %v2423
    %v2676 = vpack.c.b16 %v2428, %v2424
    %v2677 = vpack.c.b16 %v2429, %v2425
    %v2678 = vpack.c.b16 %v2430, %v2426
    %v2679 = vpack.c.b16 %v2435, %v2431
    %v2680 = vpack.c.b16 %v2436, %v2432
    %v2681 = vpack.c.b16 %v2437, %v2433
    %v2682 = vpack.c.b16 %v2438, %v2434
    %v2683 = vpack.c.b16 %v2443, %v2439
    %v2684 = vpack.c.b16 %v2444, %v2440
    %v2685 = vpack.c.b16 %v2445, %v2441
    %v2686 = vpack.c.b16 %v2446, %v2442
    %v2687 = vpack.c.b16 %v2451, %v2447
    %v2688 = vpack.c.b16 %v2452, %v2448
    %v2689 = vpack.c.b16 %v2453, %v2449
    %v2690 = vpack.c.b16 %v2454, %v2450
    %v2691 = vpack.c.b16 %v2459, %v2455
    %v2692 = vpack.c.b16 %v2460, %v2456
    %v2693 = vpack.c.b16 %v2461, %v2457
    %v2694 = vpack.c.b16 %v2462, %v2458
    %v2695 = vpack.c.b16 %v2467, %v2463
    %v2696 = vpack.c.b16 %v2468, %v2464
    %v2697 = vpack.c.b16 %v2469, %v2465
    %v2698 = vpack.c.b16 %v2470, %v2466
    %v2699 = vpack.c.b16 %v2475, %v2471
    %v2700 = vpack.c.b16 %v2476, %v2472
    %v2701 = vpack.c.b16 %v2477, %v2473
    %v2702 = vpack.c.b16 %v2478, %v2474
    %v2703 = vpack.c.b16 %v2483, %v2479
    %v2704 = vpack.c.b16 %v2484, %v2480
    %v2705 = vpack.c.b16 %v2485, %v2481
    %v2706 = vpack.c.b16 %v2486, %v2482
    %v2707 = vpack.c.b16 %v2491, %v2487
    %v2708 = vpack.c.b16 %v2492, %v2488
    %v2709 = vpack.c.b16 %v2493, %v2489
    %v2710 = vpack.c.b16 %v2494, %v2490
    %v2711 = vpack.c.b16 %v2499, %v2495
    %v2712 = vpack.c.b16 %v2500, %v2496
    %v2713 = vpack.c.b16 %v2501, %v2497
    %v2714 = vpack.c.b16 %v2502, %v2498
    %v2715 = vpack.c.b16 %v2507, %v2503
    %v2716 = vpack.c.b16 %v2508, %v2504
    %v2717 = vpack.c.b16 %v2509, %v2505
    %v2718 = vpack.c.b16 %v2510, %v2506
    %v2719 = vpack.c.b16 %v2515, %v2511
    %v2720 = vpack.c.b16 %v2516, %v2512
    %v2721 = vpack.c.b16 %v2517, %v2513
    %v2722 = vpack.c.b16 %v2518, %v2514
    %v2723 = vpack.c.b16 %v2523, %v2519
    %v2724 = vpack.c.b16 %v2524, %v2520
    %v2725 = vpack.c.b16 %v2525, %v2521
    %v2726 = vpack.c.b16 %v2526, %v2522
    %v2727 = vpack.c.b16 %v2531, %v2527
    %v2728 = vpack.c.b16 %v2532, %v2528
    %v2729 = vpack.c.b16 %v2533, %v2529
    %v2730 = vpack.c.b16 %v2534, %v2530
    %v2731 = vpack.c.b16 %v2539, %v2535
    %v2732 = vpack.c.b16 %v2540, %v2536
    %v2733 = vpack.c.b16 %v2541, %v2537
    %v2734 = vpack.c.b16 %v2542, %v2538
    %v2735 = vpack.c.b16 %v2547, %v2543
    %v2736 = vpack.c.b16 %v2548, %v2544
    %v2737 = vpack.c.b16 %v2549, %v2545
    %v2738 = vpack.c.b16 %v2550, %v2546
    %v2739 = vpack.c.b16 %v2555, %v2551
    %v2740 = vpack.c.b16 %v2556, %v2552
    %v2741 = vpack.c.b16 %v2557, %v2553
    %v2742 = vpack.c.b16 %v2558, %v2554
    %v2743 = vpack.c.b16 %v2563, %v2559
    %v2744 = vpack.c.b16 %v2564, %v2560
    %v2745 = vpack.c.b16 %v2565, %v2561
    %v2746 = vpack.c.b16 %v2566, %v2562
    %v2747 = vpack.c.b16 %v2571, %v2567
    %v2748 = vpack.c.b16 %v2572, %v2568
    %v2749 = vpack.c.b16 %v2573, %v2569
    %v2750 = vpack.c.b16 %v2574, %v2570
    %v2751 = vpack.c.b16 %v2579, %v2575
    %v2752 = vpack.c.b16 %v2580, %v2576
    %v2753 = vpack.c.b16 %v2581, %v2577
    %v2754 = vpack.c.b16 %v2582, %v2578
    %v2755 = vpack.c.b16 %v2587, %v2583
    %v2756 = vpack.c.b16 %v2588, %v2584
    %v2757 = vpack.c.b16 %v2589, %v2585
    %v2758 = vpack.c.b16 %v2590, %v2586
    %v2759 = vpack.c.b16 %v2595, %v2591
    %v2760 = vpack.c.b16 %v2596, %v2592
    %v2761 = vpack.c.b16 %v2597, %v2593
    %v2762 = vpack.c.b16 %v2598, %v2594
    %v2763 = vpack.c.b16 %v2603, %v2599
    %v2764 = vpack.c.b16 %v2604, %v2600
    %v2765 = vpack.c.b16 %v2605, %v2601
    %v2766 = vpack.c.b16 %v2606, %v2602
    %v2767 = vpack.c.b16 %v2611, %v2607
    %v2768 = vpack.c.b16 %v2612, %v2608
    %v2769 = vpack.c.b16 %v2613, %v2609
    %v2770 = vpack.c.b16 %v2614, %v2610
    %v2771 = vpack.c.b16 %v2619, %v2615
    %v2772 = vpack.c.b16 %v2620, %v2616
    %v2773 = vpack.c.b16 %v2621, %v2617
    %v2774 = vpack.c.b16 %v2622, %v2618
    %v2775 = vpack.c.b16 %v2627, %v2623
    %v2776 = vpack.c.b16 %v2628, %v2624
    %v2777 = vpack.c.b16 %v2629, %v2625
    %v2778 = vpack.c.b16 %v2630, %v2626
    %v2779 = vpack.c.b16 %v2635, %v2631
    %v2780 = vpack.c.b16 %v2636, %v2632
    %v2781 = vpack.c.b16 %v2637, %v2633
    %v2782 = vpack.c.b16 %v2638, %v2634
    %v2783 = vpack.c.b16 %v2643, %v2639
    %v2784 = vpack.c.b16 %v2644, %v2640
    %v2785 = vpack.c.b16 %v2645, %v2641
    %v2786 = vpack.c.b16 %v2646, %v2642
    %v2787 = vpack.c.b16 %v2651, %v2647
    %v2788 = vpack.c.b16 %v2652, %v2648
    %v2789 = vpack.c.b16 %v2653, %v2649
    %v2790 = vpack.c.b16 %v2654, %v2650
    %v2791 = vpack.c.b16 %v2659, %v2655
    %v2792 = vpack.c.b16 %v2660, %v2656
    %v2793 = vpack.c.b16 %v2661, %v2657
    %v2794 = vpack.c.b16 %v2662, %v2658
    %v2795 = vpack.c.b16 %v2667, %v2663
    %v2796 = vpack.c.b16 %v2668, %v2664
    %v2797 = vpack.c.b16 %v2669, %v2665
    %v2798 = vpack.c.b16 %v2670, %v2666
    %2927 = vmatpush.bf16.msra.mxu0 %v2699
    %2928 = vmatpush.bf16.msra.mxu0 %v2695
    %2929 = vmatpush.bf16.msra.mxu0 %v2691
    %2930 = vmatpush.bf16.msra.mxu0 %v2687
    %2931 = vmatpush.bf16.msra.mxu0 %v2683
    %2932 = vmatpush.bf16.msra.mxu0 %v2679
    %2933 = vmatpush.bf16.msra.mxu0 %v2675
    %2934 = vmatpush.bf16.msra.mxu0 %v2671
    %2935 = vmatmul.bf16.gmra.mxu0 %v2145
    %v2936 = vpop.f32.mrf.mxu0
    %v2937 = vadd.f32 %v2279, %v2936
    %v2938 = vpop.f32.mrf.mxu0
    %2939 = vdwg.mxu0
    %2940 = vmatpush.bf16.msra.mxu0 %v2731
    %2941 = vmatpush.bf16.msra.mxu0 %v2727
    %2942 = vmatpush.bf16.msra.mxu0 %v2723
    %2943 = vmatpush.bf16.msra.mxu0 %v2719
    %2944 = vmatpush.bf16.msra.mxu0 %v2715
    %2945 = vmatpush.bf16.msra.mxu0 %v2711
    %2946 = vmatpush.bf16.msra.mxu0 %v2707
    %2947 = vmatpush.bf16.msra.mxu0 %v2703
    %2948 = vmatmul.bf16.gmra.mxu0 %v2146
    %v2949 = vpop.f32.mrf.mxu0
    %v2950 = vadd.f32 %v2937, %v2949
    %v2951 = vpop.f32.mrf.mxu0
    %2952 = vdwg.mxu0
    %2953 = vmatpush.bf16.msra.mxu0 %v2763
    %2954 = vmatpush.bf16.msra.mxu0 %v2759
    %2955 = vmatpush.bf16.msra.mxu0 %v2755
    %2956 = vmatpush.bf16.msra.mxu0 %v2751
    %2957 = vmatpush.bf16.msra.mxu0 %v2747
    %2958 = vmatpush.bf16.msra.mxu0 %v2743
    %2959 = vmatpush.bf16.msra.mxu0 %v2739
    %2960 = vmatpush.bf16.msra.mxu0 %v2735
    %2961 = vmatmul.bf16.gmra.mxu0 %v2147
    %v2962 = vpop.f32.mrf.mxu0
    %v2963 = vadd.f32 %v2950, %v2962
    %v2964 = vpop.f32.mrf.mxu0
    %2965 = vdwg.mxu0
    %2966 = vmatpush.bf16.msra.mxu0 %v2795
    %2967 = vmatpush.bf16.msra.mxu0 %v2791
    %2968 = vmatpush.bf16.msra.mxu0 %v2787
    %2969 = vmatpush.bf16.msra.mxu0 %v2783
    %2970 = vmatpush.bf16.msra.mxu0 %v2779
    %2971 = vmatpush.bf16.msra.mxu0 %v2775
    %2972 = vmatpush.bf16.msra.mxu0 %v2771
    %2973 = vmatpush.bf16.msra.mxu0 %v2767
    %2974 = vmatmul.bf16.gmra.mxu0 %v2148
    %v2975 = vpop.f32.mrf.mxu0
    %v2976 = vadd.f32 %v2963, %v2975
    %v2977 = vpop.f32.mrf.mxu0
    %2978 = vdwg.mxu0
    %2979 = vmatpush.bf16.msra.mxu0 %v2700
    %2980 = vmatpush.bf16.msra.mxu0 %v2696
    %2981 = vmatpush.bf16.msra.mxu0 %v2692
    %2982 = vmatpush.bf16.msra.mxu0 %v2688
    %2983 = vmatpush.bf16.msra.mxu0 %v2684
    %2984 = vmatpush.bf16.msra.mxu0 %v2680
    %2985 = vmatpush.bf16.msra.mxu0 %v2676
    %2986 = vmatpush.bf16.msra.mxu0 %v2672
    %2987 = vmatmul.bf16.gmra.mxu0 %v2145
    %v2988 = vpop.f32.mrf.mxu0
    %v2989 = vadd.f32 %v2280, %v2988
    %v2990 = vpop.f32.mrf.mxu0
    %2991 = vdwg.mxu0
    %2992 = vmatpush.bf16.msra.mxu0 %v2732
    %2993 = vmatpush.bf16.msra.mxu0 %v2728
    %2994 = vmatpush.bf16.msra.mxu0 %v2724
    %2995 = vmatpush.bf16.msra.mxu0 %v2720
    %2996 = vmatpush.bf16.msra.mxu0 %v2716
    %2997 = vmatpush.bf16.msra.mxu0 %v2712
    %2998 = vmatpush.bf16.msra.mxu0 %v2708
    %2999 = vmatpush.bf16.msra.mxu0 %v2704
    %3000 = vmatmul.bf16.gmra.mxu0 %v2146
    %v3001 = vpop.f32.mrf.mxu0
    %v3002 = vadd.f32 %v2989, %v3001
    %v3003 = vpop.f32.mrf.mxu0
    %3004 = vdwg.mxu0
    %3005 = vmatpush.bf16.msra.mxu0 %v2764
    %3006 = vmatpush.bf16.msra.mxu0 %v2760
    %3007 = vmatpush.bf16.msra.mxu0 %v2756
    %3008 = vmatpush.bf16.msra.mxu0 %v2752
    %3009 = vmatpush.bf16.msra.mxu0 %v2748
    %3010 = vmatpush.bf16.msra.mxu0 %v2744
    %3011 = vmatpush.bf16.msra.mxu0 %v2740
    %3012 = vmatpush.bf16.msra.mxu0 %v2736
    %3013 = vmatmul.bf16.gmra.mxu0 %v2147
    %v3014 = vpop.f32.mrf.mxu0
    %v3015 = vadd.f32 %v3002, %v3014
    %v3016 = vpop.f32.mrf.mxu0
    %3017 = vdwg.mxu0
    %3018 = vmatpush.bf16.msra.mxu0 %v2796
    %3019 = vmatpush.bf16.msra.mxu0 %v2792
    %3020 = vmatpush.bf16.msra.mxu0 %v2788
    %3021 = vmatpush.bf16.msra.mxu0 %v2784
    %3022 = vmatpush.bf16.msra.mxu0 %v2780
    %3023 = vmatpush.bf16.msra.mxu0 %v2776
    %3024 = vmatpush.bf16.msra.mxu0 %v2772
    %3025 = vmatpush.bf16.msra.mxu0 %v2768
    %3026 = vmatmul.bf16.gmra.mxu0 %v2148
    %v3027 = vpop.f32.mrf.mxu0
    %v3028 = vadd.f32 %v3015, %v3027
    %v3029 = vpop.f32.mrf.mxu0
    %3030 = vdwg.mxu0
    %3031 = vmatpush.bf16.msra.mxu0 %v2701
    %3032 = vmatpush.bf16.msra.mxu0 %v2697
    %3033 = vmatpush.bf16.msra.mxu0 %v2693
    %3034 = vmatpush.bf16.msra.mxu0 %v2689
    %3035 = vmatpush.bf16.msra.mxu0 %v2685
    %3036 = vmatpush.bf16.msra.mxu0 %v2681
    %3037 = vmatpush.bf16.msra.mxu0 %v2677
    %3038 = vmatpush.bf16.msra.mxu0 %v2673
    %3039 = vmatmul.bf16.gmra.mxu0 %v2145
    %v3040 = vpop.f32.mrf.mxu0
    %v3041 = vadd.f32 %v2281, %v3040
    %v3042 = vpop.f32.mrf.mxu0
    %3043 = vdwg.mxu0
    %3044 = vmatpush.bf16.msra.mxu0 %v2733
    %3045 = vmatpush.bf16.msra.mxu0 %v2729
    %3046 = vmatpush.bf16.msra.mxu0 %v2725
    %3047 = vmatpush.bf16.msra.mxu0 %v2721
    %3048 = vmatpush.bf16.msra.mxu0 %v2717
    %3049 = vmatpush.bf16.msra.mxu0 %v2713
    %3050 = vmatpush.bf16.msra.mxu0 %v2709
    %3051 = vmatpush.bf16.msra.mxu0 %v2705
    %3052 = vmatmul.bf16.gmra.mxu0 %v2146
    %v3053 = vpop.f32.mrf.mxu0
    %v3054 = vadd.f32 %v3041, %v3053
    %v3055 = vpop.f32.mrf.mxu0
    %3056 = vdwg.mxu0
    %3057 = vmatpush.bf16.msra.mxu0 %v2765
    %3058 = vmatpush.bf16.msra.mxu0 %v2761
    %3059 = vmatpush.bf16.msra.mxu0 %v2757
    %3060 = vmatpush.bf16.msra.mxu0 %v2753
    %3061 = vmatpush.bf16.msra.mxu0 %v2749
    %3062 = vmatpush.bf16.msra.mxu0 %v2745
    %3063 = vmatpush.bf16.msra.mxu0 %v2741
    %3064 = vmatpush.bf16.msra.mxu0 %v2737
    %3065 = vmatmul.bf16.gmra.mxu0 %v2147
    %v3066 = vpop.f32.mrf.mxu0
    %v3067 = vadd.f32 %v3054, %v3066
    %v3068 = vpop.f32.mrf.mxu0
    %3069 = vdwg.mxu0
    %3070 = vmatpush.bf16.msra.mxu0 %v2797
    %3071 = vmatpush.bf16.msra.mxu0 %v2793
    %3072 = vmatpush.bf16.msra.mxu0 %v2789
    %3073 = vmatpush.bf16.msra.mxu0 %v2785
    %3074 = vmatpush.bf16.msra.mxu0 %v2781
    %3075 = vmatpush.bf16.msra.mxu0 %v2777
    %3076 = vmatpush.bf16.msra.mxu0 %v2773
    %3077 = vmatpush.bf16.msra.mxu0 %v2769
    %3078 = vmatmul.bf16.gmra.mxu0 %v2148
    %v3079 = vpop.f32.mrf.mxu0
    %v3080 = vadd.f32 %v3067, %v3079
    %v3081 = vpop.f32.mrf.mxu0
    %3082 = vdwg.mxu0
    %3083 = vmatpush.bf16.msra.mxu0 %v2702
    %3084 = vmatpush.bf16.msra.mxu0 %v2698
    %3085 = vmatpush.bf16.msra.mxu0 %v2694
    %3086 = vmatpush.bf16.msra.mxu0 %v2690
    %3087 = vmatpush.bf16.msra.mxu0 %v2686
    %3088 = vmatpush.bf16.msra.mxu0 %v2682
    %3089 = vmatpush.bf16.msra.mxu0 %v2678
    %3090 = vmatpush.bf16.msra.mxu0 %v2674
    %3091 = vmatmul.bf16.gmra.mxu0 %v2145
    %v3092 = vpop.f32.mrf.mxu0
    %v3093 = vadd.f32 %v2282, %v3092
    %v3094 = vpop.f32.mrf.mxu0
    %3095 = vdwg.mxu0
    %3096 = vmatpush.bf16.msra.mxu0 %v2734
    %3097 = vmatpush.bf16.msra.mxu0 %v2730
    %3098 = vmatpush.bf16.msra.mxu0 %v2726
    %3099 = vmatpush.bf16.msra.mxu0 %v2722
    %3100 = vmatpush.bf16.msra.mxu0 %v2718
    %3101 = vmatpush.bf16.msra.mxu0 %v2714
    %3102 = vmatpush.bf16.msra.mxu0 %v2710
    %3103 = vmatpush.bf16.msra.mxu0 %v2706
    %3104 = vmatmul.bf16.gmra.mxu0 %v2146
    %v3105 = vpop.f32.mrf.mxu0
    %v3106 = vadd.f32 %v3093, %v3105
    %v3107 = vpop.f32.mrf.mxu0
    %3108 = vdwg.mxu0
    %3109 = vmatpush.bf16.msra.mxu0 %v2766
    %3110 = vmatpush.bf16.msra.mxu0 %v2762
    %3111 = vmatpush.bf16.msra.mxu0 %v2758
    %3112 = vmatpush.bf16.msra.mxu0 %v2754
    %3113 = vmatpush.bf16.msra.mxu0 %v2750
    %3114 = vmatpush.bf16.msra.mxu0 %v2746
    %3115 = vmatpush.bf16.msra.mxu0 %v2742
    %3116 = vmatpush.bf16.msra.mxu0 %v2738
    %3117 = vmatmul.bf16.gmra.mxu0 %v2147
    %v3118 = vpop.f32.mrf.mxu0
    %v3119 = vadd.f32 %v3106, %v3118
    %v3120 = vpop.f32.mrf.mxu0
    %3121 = vdwg.mxu0
    %3122 = vmatpush.bf16.msra.mxu0 %v2798
    %3123 = vmatpush.bf16.msra.mxu0 %v2794
    %3124 = vmatpush.bf16.msra.mxu0 %v2790
    %3125 = vmatpush.bf16.msra.mxu0 %v2786
    %3126 = vmatpush.bf16.msra.mxu0 %v2782
    %3127 = vmatpush.bf16.msra.mxu0 %v2778
    %3128 = vmatpush.bf16.msra.mxu0 %v2774
    %3129 = vmatpush.bf16.msra.mxu0 %v2770
    %3130 = vmatmul.bf16.gmra.mxu0 %v2148
    %v3131 = vpop.f32.mrf.mxu0
    %v3132 = vadd.f32 %v3119, %v3131
    %v3133 = vpop.f32.mrf.mxu0
    %3134 = vdwg.mxu0
    %v3135 = vmax.f32 %v2976, 0.0
    %v3136 = vmax.f32 %v3028, 0.0
    %v3137 = vmax.f32 %v3080, 0.0
    %v3138 = vmax.f32 %v3132, 0.0
    %v3139 = vmin.f32 %v3135, 1.0
    %v3140 = vmin.f32 %v3136, 1.0
    %v3141 = vmin.f32 %v3137, 1.0
    %v3142 = vmin.f32 %v3138, 1.0
    %v3143 = vpack.c.bf16 %v3139, %v3139
    %v3144 = vpack.c.bf16 %v3140, %v3140
    %v3145 = vpack.c.bf16 %v3141, %v3141
    %v3146 = vpack.c.bf16 %v3142, %v3142
    %v3147 = vld [vmem:[#allocation11] sm:$0xf]
    %v3148 = vld [vmem:[#allocation11 + $0x4] sm:$0xf]
    %v3149 = vld [vmem:[#allocation11 + $0x8] sm:$0xf]
    %v3150 = vld [vmem:[#allocation11 + $0xc] sm:$0xf]
    %v3151 = vld [vmem:[#allocation11 + $0x10] sm:$0xf]
    %v3152 = vld [vmem:[#allocation11 + $0x14] sm:$0xf]
    %v3153 = vld [vmem:[#allocation11 + $0x18] sm:$0xf]
    %v3154 = vld [vmem:[#allocation11 + $0x1c] sm:$0xf]
    %v3155 = vld [vmem:[#allocation11 + $0x20] sm:$0xf]
    %v3156 = vld [vmem:[#allocation11 + $0x24] sm:$0xf]
    %v3157 = vld [vmem:[#allocation11 + $0x28] sm:$0xf]
    %v3158 = vld [vmem:[#allocation11 + $0x2c] sm:$0xf]
    %v3159 = vld [vmem:[#allocation11 + $0x30] sm:$0xf]
    %v3160 = vld [vmem:[#allocation11 + $0x34] sm:$0xf]
    %v3161 = vld [vmem:[#allocation11 + $0x38] sm:$0xf]
    %v3162 = vld [vmem:[#allocation11 + $0x3c] sm:$0xf]
    %v3163 = vld [vmem:[#allocation11 + $0x40] sm:$0xf]
    %v3164 = vld [vmem:[#allocation11 + $0x44] sm:$0xf]
    %v3165 = vld [vmem:[#allocation11 + $0x48] sm:$0xf]
    %v3166 = vld [vmem:[#allocation11 + $0x4c] sm:$0xf]
    %v3167 = vld [vmem:[#allocation11 + $0x50] sm:$0xf]
    %v3168 = vld [vmem:[#allocation11 + $0x54] sm:$0xf]
    %v3169 = vld [vmem:[#allocation11 + $0x58] sm:$0xf]
    %v3170 = vld [vmem:[#allocation11 + $0x5c] sm:$0xf]
    %v3171 = vld [vmem:[#allocation11 + $0x60] sm:$0xf]
    %v3172 = vld [vmem:[#allocation11 + $0x64] sm:$0xf]
    %v3173 = vld [vmem:[#allocation11 + $0x68] sm:$0xf]
    %v3174 = vld [vmem:[#allocation11 + $0x6c] sm:$0xf]
    %v3175 = vld [vmem:[#allocation11 + $0x70] sm:$0xf]
    %v3176 = vld [vmem:[#allocation11 + $0x74] sm:$0xf]
    %v3177 = vld [vmem:[#allocation11 + $0x78] sm:$0xf]
    %v3178 = vld [vmem:[#allocation11 + $0x7c] sm:$0xf]
    %v3179 = vld [vmem:[#allocation11 + $0x80] sm:$0xf]
    %v3180 = vld [vmem:[#allocation11 + $0x84] sm:$0xf]
    %v3181 = vld [vmem:[#allocation11 + $0x88] sm:$0xf]
    %v3182 = vld [vmem:[#allocation11 + $0x8c] sm:$0xf]
    %v3183 = vld [vmem:[#allocation11 + $0x90] sm:$0xf]
    %v3184 = vld [vmem:[#allocation11 + $0x94] sm:$0xf]
    %v3185 = vld [vmem:[#allocation11 + $0x98] sm:$0xf]
    %v3186 = vld [vmem:[#allocation11 + $0x9c] sm:$0xf]
    %v3187 = vld [vmem:[#allocation11 + $0xa0] sm:$0xf]
    %v3188 = vld [vmem:[#allocation11 + $0xa4] sm:$0xf]
    %v3189 = vld [vmem:[#allocation11 + $0xa8] sm:$0xf]
    %v3190 = vld [vmem:[#allocation11 + $0xac] sm:$0xf]
    %v3191 = vld [vmem:[#allocation11 + $0xb0] sm:$0xf]
    %v3192 = vld [vmem:[#allocation11 + $0xb4] sm:$0xf]
    %v3193 = vld [vmem:[#allocation11 + $0xb8] sm:$0xf]
    %v3194 = vld [vmem:[#allocation11 + $0xbc] sm:$0xf]
    %v3195 = vld [vmem:[#allocation11 + $0xc0] sm:$0xf]
    %v3196 = vld [vmem:[#allocation11 + $0xc4] sm:$0xf]
    %v3197 = vld [vmem:[#allocation11 + $0xc8] sm:$0xf]
    %v3198 = vld [vmem:[#allocation11 + $0xcc] sm:$0xf]
    %v3199 = vld [vmem:[#allocation11 + $0xd0] sm:$0xf]
    %v3200 = vld [vmem:[#allocation11 + $0xd4] sm:$0xf]
    %v3201 = vld [vmem:[#allocation11 + $0xd8] sm:$0xf]
    %v3202 = vld [vmem:[#allocation11 + $0xdc] sm:$0xf]
    %v3203 = vld [vmem:[#allocation11 + $0xe0] sm:$0xf]
    %v3204 = vld [vmem:[#allocation11 + $0xe4] sm:$0xf]
    %v3205 = vld [vmem:[#allocation11 + $0xe8] sm:$0xf]
    %v3206 = vld [vmem:[#allocation11 + $0xec] sm:$0xf]
    %v3207 = vld [vmem:[#allocation11 + $0xf0] sm:$0xf]
    %v3208 = vld [vmem:[#allocation11 + $0xf4] sm:$0xf]
    %v3209 = vld [vmem:[#allocation11 + $0xf8] sm:$0xf]
    %v3210 = vld [vmem:[#allocation11 + $0xfc] sm:$0xf]
    %v3211 = vld [vmem:[%s6] sm:$0x1]
    %v3213 = vperm.slane %v3211, 0
    %v3279 = vunpack.c.l.b16 %v3147
    %v3280 = vunpack.c.l.b16 %v3148
    %v3281 = vunpack.c.l.b16 %v3149
    %v3282 = vunpack.c.l.b16 %v3150
    %v3283 = vunpack.c.l.b16 %v3151
    %v3284 = vunpack.c.l.b16 %v3152
    %v3285 = vunpack.c.l.b16 %v3153
    %v3286 = vunpack.c.l.b16 %v3154
    %v3287 = vunpack.c.l.b16 %v3155
    %v3288 = vunpack.c.l.b16 %v3156
    %v3289 = vunpack.c.l.b16 %v3157
    %v3290 = vunpack.c.l.b16 %v3158
    %v3291 = vunpack.c.l.b16 %v3159
    %v3292 = vunpack.c.l.b16 %v3160
    %v3293 = vunpack.c.l.b16 %v3161
    %v3294 = vunpack.c.l.b16 %v3162
    %v3295 = vunpack.c.l.b16 %v3163
    %v3296 = vunpack.c.l.b16 %v3164
    %v3297 = vunpack.c.l.b16 %v3165
    %v3298 = vunpack.c.l.b16 %v3166
    %v3299 = vunpack.c.l.b16 %v3167
    %v3300 = vunpack.c.l.b16 %v3168
    %v3301 = vunpack.c.l.b16 %v3169
    %v3302 = vunpack.c.l.b16 %v3170
    %v3303 = vunpack.c.l.b16 %v3171
    %v3304 = vunpack.c.l.b16 %v3172
    %v3305 = vunpack.c.l.b16 %v3173
    %v3306 = vunpack.c.l.b16 %v3174
    %v3307 = vunpack.c.l.b16 %v3175
    %v3308 = vunpack.c.l.b16 %v3176
    %v3309 = vunpack.c.l.b16 %v3177
    %v3310 = vunpack.c.l.b16 %v3178
    %v3311 = vunpack.c.l.b16 %v3179
    %v3312 = vunpack.c.l.b16 %v3180
    %v3313 = vunpack.c.l.b16 %v3181
    %v3314 = vunpack.c.l.b16 %v3182
    %v3315 = vunpack.c.l.b16 %v3183
    %v3316 = vunpack.c.l.b16 %v3184
    %v3317 = vunpack.c.l.b16 %v3185
    %v3318 = vunpack.c.l.b16 %v3186
    %v3319 = vunpack.c.l.b16 %v3187
    %v3320 = vunpack.c.l.b16 %v3188
    %v3321 = vunpack.c.l.b16 %v3189
    %v3322 = vunpack.c.l.b16 %v3190
    %v3323 = vunpack.c.l.b16 %v3191
    %v3324 = vunpack.c.l.b16 %v3192
    %v3325 = vunpack.c.l.b16 %v3193
    %v3326 = vunpack.c.l.b16 %v3194
    %v3327 = vunpack.c.l.b16 %v3195
    %v3328 = vunpack.c.l.b16 %v3196
    %v3329 = vunpack.c.l.b16 %v3197
    %v3330 = vunpack.c.l.b16 %v3198
    %v3331 = vunpack.c.l.b16 %v3199
    %v3332 = vunpack.c.l.b16 %v3200
    %v3333 = vunpack.c.l.b16 %v3201
    %v3334 = vunpack.c.l.b16 %v3202
    %v3335 = vunpack.c.l.b16 %v3203
    %v3336 = vunpack.c.l.b16 %v3204
    %v3337 = vunpack.c.l.b16 %v3205
    %v3338 = vunpack.c.l.b16 %v3206
    %v3339 = vunpack.c.l.b16 %v3207
    %v3340 = vunpack.c.l.b16 %v3208
    %v3341 = vunpack.c.l.b16 %v3209
    %v3342 = vunpack.c.l.b16 %v3210
    %v3343 = vpack.c.b16 %v3280, %v3279
    %v3344 = vpack.c.b16 %v3282, %v3281
    %v3345 = vpack.c.b16 %v3284, %v3283
    %v3346 = vpack.c.b16 %v3286, %v3285
    %v3347 = vpack.c.b16 %v3288, %v3287
    %v3348 = vpack.c.b16 %v3290, %v3289
    %v3349 = vpack.c.b16 %v3292, %v3291
    %v3350 = vpack.c.b16 %v3294, %v3293
    %v3351 = vpack.c.b16 %v3296, %v3295
    %v3352 = vpack.c.b16 %v3298, %v3297
    %v3353 = vpack.c.b16 %v3300, %v3299
    %v3354 = vpack.c.b16 %v3302, %v3301
    %v3355 = vpack.c.b16 %v3304, %v3303
    %v3356 = vpack.c.b16 %v3306, %v3305
    %v3357 = vpack.c.b16 %v3308, %v3307
    %v3358 = vpack.c.b16 %v3310, %v3309
    %v3359 = vpack.c.b16 %v3312, %v3311
    %v3360 = vpack.c.b16 %v3314, %v3313
    %v3361 = vpack.c.b16 %v3316, %v3315
    %v3362 = vpack.c.b16 %v3318, %v3317
    %v3363 = vpack.c.b16 %v3320, %v3319
    %v3364 = vpack.c.b16 %v3322, %v3321
    %v3365 = vpack.c.b16 %v3324, %v3323
    %v3366 = vpack.c.b16 %v3326, %v3325
    %v3367 = vpack.c.b16 %v3328, %v3327
    %v3368 = vpack.c.b16 %v3330, %v3329
    %v3369 = vpack.c.b16 %v3332, %v3331
    %v3370 = vpack.c.b16 %v3334, %v3333
    %v3371 = vpack.c.b16 %v3336, %v3335
    %v3372 = vpack.c.b16 %v3338, %v3337
    %v3373 = vpack.c.b16 %v3340, %v3339
    %v3374 = vpack.c.b16 %v3342, %v3341
    %3407 = vmatpush.bf16.msra.mxu0 %v3350
    %3408 = vmatpush.bf16.msra.mxu0 %v3349
    %3409 = vmatpush.bf16.msra.mxu0 %v3348
    %3410 = vmatpush.bf16.msra.mxu0 %v3347
    %3411 = vmatpush.bf16.msra.mxu0 %v3346
    %3412 = vmatpush.bf16.msra.mxu0 %v3345
    %3413 = vmatpush.bf16.msra.mxu0 %v3344
    %3414 = vmatpush.bf16.msra.mxu0 %v3343
    %3415 = vmatmul.bf16.gmra.mxu0 %v3143
    %v3416 = vpop.f32.mrf.mxu0
    %v3417 = vadd.f32 %v3213, %v3416
    %v3418 = vpop.f32.mrf.mxu0
    %3419 = vdwg.mxu0
    %3420 = vmatpush.bf16.msra.mxu0 %v3358
    %3421 = vmatpush.bf16.msra.mxu0 %v3357
    %3422 = vmatpush.bf16.msra.mxu0 %v3356
    %3423 = vmatpush.bf16.msra.mxu0 %v3355
    %3424 = vmatpush.bf16.msra.mxu0 %v3354
    %3425 = vmatpush.bf16.msra.mxu0 %v3353
    %3426 = vmatpush.bf16.msra.mxu0 %v3352
    %3427 = vmatpush.bf16.msra.mxu0 %v3351
    %3428 = vmatmul.bf16.gmra.mxu0 %v3144
    %v3429 = vpop.f32.mrf.mxu0
    %v3430 = vadd.f32 %v3417, %v3429
    %v3431 = vpop.f32.mrf.mxu0
    %3432 = vdwg.mxu0
    %3433 = vmatpush.bf16.msra.mxu0 %v3366
    %3434 = vmatpush.bf16.msra.mxu0 %v3365
    %3435 = vmatpush.bf16.msra.mxu0 %v3364
    %3436 = vmatpush.bf16.msra.mxu0 %v3363
    %3437 = vmatpush.bf16.msra.mxu0 %v3362
    %3438 = vmatpush.bf16.msra.mxu0 %v3361
    %3439 = vmatpush.bf16.msra.mxu0 %v3360
    %3440 = vmatpush.bf16.msra.mxu0 %v3359
    %3441 = vmatmul.bf16.gmra.mxu0 %v3145
    %v3442 = vpop.f32.mrf.mxu0
    %v3443 = vadd.f32 %v3430, %v3442
    %v3444 = vpop.f32.mrf.mxu0
    %3445 = vdwg.mxu0
    %3446 = vmatpush.bf16.msra.mxu0 %v3374
    %3447 = vmatpush.bf16.msra.mxu0 %v3373
    %3448 = vmatpush.bf16.msra.mxu0 %v3372
    %3449 = vmatpush.bf16.msra.mxu0 %v3371
    %3450 = vmatpush.bf16.msra.mxu0 %v3370
    %3451 = vmatpush.bf16.msra.mxu0 %v3369
    %3452 = vmatpush.bf16.msra.mxu0 %v3368
    %3453 = vmatpush.bf16.msra.mxu0 %v3367
    %3454 = vmatmul.bf16.gmra.mxu0 %v3146
    %v3455 = vpop.f32.mrf.mxu0
    %v3456 = vadd.f32 %v3443, %v3455
    %v3457 = vpop.f32.mrf.mxu0
    %3458 = vdwg.mxu0
    %v3459 = vmax.f32 %v3456, -1.0
    %v3460 = vmin.f32 %v3459, 1.0
    %v3461 = vld [vmem:[%s7] sm:$0x1]
    %v3463 = vperm.slane %v3461, 0
    %v3465 = vadd.f32 %v3460, %v3463
    %v3466 = vmul.f32 %v3465, 1.442695
    %v3467 = vpow.pop %v3466
    %3468 = vadd.xlane.f32.xlu0 %v3467
    %v3469 = vpop.xlane.xlu0 %3468
    %v3470 = vrcp.pop %v3469
    %v3471 = vmul.f32 %v3467, %v3470
    %v3472 = vpack.c.bf16 %v3471, %v3471
    %v3474 = vrot.slane %v3472, 3
    %vm3475 = vcmask 1040384
    %v3478 = vsel %vm3475, %v3472, %v3474
    %vm3479 = vcmask 1041409
    %v3480 = vsel %vm3479, %v3472, %v3474
    %v3482 = vrot.slane %v3480, 1
    %vm3483 = vcmask 1042434
    %v3484 = vsel %vm3483, %v3472, %v3474
    %v3486 = vrot.slane %v3484, 2
    %vm3487 = vcmask 1043459
    %v3488 = vsel %vm3487, %v3472, %v3474
    %v3490 = vrot.slane %v3488, 3
    %3495 = vst [vmem:[#allocation13] sm:$0x1] %v3478
    %3496 = vst [vmem:[#allocation13 + $0x1] sm:$0x1] %v3482
    %3497 = vst [vmem:[#allocation13 + $0x2] sm:$0x1] %v3486
    %3498 = vst [vmem:[#allocation13 + $0x3] sm:$0x1] %v3490
    // Predicated region
    $region58: #{tpu_custom_call.1} parent=1 // pred_check
      _
    $region59: #{tpu_custom_call.1} parent=1 // pred_check_branch
      %3500 = sbr.rel (0) target = $region61
    $region60: #{tpu_custom_call.1} parent=1 // pred_region
      %3502 = vsyncadd [#allocation4], 48
      %s3503 = sshll.u32 [#allocation13], 4
      %s3504 = int_to_ptr.vmem [resolvable:$true] %s3503
      %s3505 = sshll.u32 %s8, 4
      %s3506 = int_to_ptr.hbm [resolvable:$true] %s3505
      %3511 = dma.vmem_to_hbm [thread:$0]  %s3504, 16, %s3506, [#allocation4], 16, 16, 1
    $region61: #{tpu_custom_call.1} parent=1 // pred_fallthru
      _
    // Predicated region
    $region62: #{tpu_custom_call.1} parent=1 // pred_check
      _
    $region63: #{tpu_custom_call.1} parent=1 // pred_check_branch
      %3513 = sbr.rel (0) target = $region65
    $region64: #{tpu_custom_call.1} parent=1 // pred_region
      %3515 = dma.done [#allocation4], 64
    $region65: #{tpu_custom_call.1} parent=1 // pred_fallthru
      _
    %3516 = vsyncpa [#allocation3], 1
    %3517 = vsyncpa [#allocation6], 1
    %3518 = vsyncpa [#allocation9], 1
    %3519 = vsyncpa [#allocation12], 1
    %3520 = vsyncpa [#allocation4], 1

</llo_original>
